<compile_context>
chip_gen: v7x
topology: tpu7x:2x2x1
jax: 0.10.0
libtpu: 0.0.40
codegen_flags: <defaults>
</compile_context>

<pallas_src>
import jax
import jax.numpy as jnp
import numpy as np
from jax import lax
from jax.experimental import pallas as pl
from jax.experimental.pallas import tpu as pltpu


def _make_hmm_kernel(T_max, N, b_tile, unroll):
    """Builds the forward-algorithm kernel for fixed (T_max, N, b_tile)."""

    def kernel(t_ref, prior_ref, trans_ref, emiss_ref, out_ref):
        # t_ref     : (1, b_tile)        int32  sequence lengths T
        # prior_ref : (N, 1)             f32    state priors (probability domain)
        # trans_ref : (N, N)             f32    transition matrix A[i, j] (prob domain)
        # emiss_ref : (T_max, N, b_tile) f32    emission probs gathered at observations
        # out_ref   : (1, b_tile)        f32    p(x) per sequence
        t_len = t_ref[...]                                   # (1, b_tile) int32
        A = trans_ref[...]                                   # (N, N)

        if N <= 16:
            # Tiny-N transition stays on the VPU: s[i,b] = sum_j A[i,j] * ahat[j,b]
            # as N unrolled broadcast multiply-accumulates.  Lane-broadcast columns
            # of A are hoisted out of the time loop (JAX does not CSE broadcasts).
            a_cols = tuple(
                jnp.broadcast_to(A[:, j:j + 1], (N, b_tile)) for j in range(N)
            )

            def transition(ahat):
                s = a_cols[0] * ahat[0:1, :]
                for j in range(1, N):
                    s = s + a_cols[j] * ahat[j:j + 1, :]
                return s
        else:
            def transition(ahat):
                return jnp.dot(A, ahat, preferred_element_type=jnp.float32)

        # ---- t = 0 : alpha_0[i,b] = E[i, x_b0] * prior[i] --------------------
        a0 = emiss_ref[0] * prior_ref[...]                   # (N, b_tile)
        c0 = jnp.sum(a0, axis=0, keepdims=True)              # (1, b_tile), > 0
        ahat0 = a0 / c0                                      # normalized alpha
        logp0 = jnp.where(0 < t_len, jnp.log(c0), 0.0)       # running log p(x_{1:t})

        # ---- t = 1 .. T_max-1 : scaled probability-domain recursion ----------
        # alpha_t = E_t * (A @ ahat_{t-1});  c_t = sum_i alpha_t;  ahat_t = alpha_t/c_t
        # log p(x_{1:T_b}) = sum_{t < T_b} log c_t
        def body(t, carry):
            ahat, logp = carry
            a_t = emiss_ref[t] * transition(ahat)            # (N, b_tile)
            c = jnp.sum(a_t, axis=0, keepdims=True)          # (1, b_tile)
            ahat = a_t / c
            logp = jnp.where(t < t_len, logp + jnp.log(c), logp)
            return ahat, logp

        _, logp = lax.fori_loop(1, T_max, body, (ahat0, logp0), unroll=unroll)
        out_ref[...] = jnp.exp(logp)

    return kernel


def hmm_forward_pallas(x, T, transitions, emissions, priors, *, b_tile=128):
    """
    x : (B, T_max) int32 observation indices
    T : (B,)       int32 sequence lengths (1 <= T <= T_max)
    transitions : (N, N) unnormalized transition params (softmaxed over dim 0)
    emissions   : (N, M) unnormalized emission params   (softmaxed over dim 1)
    priors      : (N,)   unnormalized prior params      (softmaxed over dim 0)
    returns (B, 1) float32 probabilities p(x)  (matches torch HMM.forward)
    """
    B, T_max = x.shape
    N = priors.shape[0]
    assert b_tile % 128 == 0, "b_tile must be a multiple of the 128-lane width"

    # --- parameter normalization + emission gather (glue, probability domain) ---
    prior_p = jax.nn.softmax(priors.astype(jnp.float32), axis=0)          # (N,)
    emiss_p = jax.nn.softmax(emissions.astype(jnp.float32), axis=1)       # (N, M)
    trans_p = jax.nn.softmax(transitions.astype(jnp.float32), axis=0)     # (N, N) = A[i, j]

    # Pad batch up to a multiple of the lane tile (dummy sequences: x=0, T=0 -> p=1, discarded).
    n_blocks = -(-B // b_tile)
    B_pad = n_blocks * b_tile
    x_p = jnp.pad(x.astype(jnp.int32), ((0, B_pad - B), (0, 0)))
    T_p = jnp.pad(T.astype(jnp.int32), (0, B_pad - B)).reshape(1, B_pad)

    # Lane-dense, time-major emission tensor: (T_max, N, B_pad); batch in lanes.
    emiss_obs = jnp.transpose(emiss_p[:, x_p], (2, 0, 1)).astype(jnp.float32)
    prior_in = prior_p.reshape(N, 1)

    trip = T_max - 1
    unroll = True if trip <= 32 else 8
    kernel = _make_hmm_kernel(T_max, N, b_tile, unroll)

    # VMEM budget: double-buffered dense emission tiles + small params, with headroom.
    emiss_block_bytes = T_max * max(N, 8) * b_tile * 4
    vmem_limit = int(min(max(4 * emiss_block_bytes + (2 << 20), 16 << 20), 64 << 20))

    # TODO(synk): per-tile max(T) via scalar prefetch could bound the time loop for
    # length-sorted batches; kept at a static T_max bound to preserve full unrolling.
    out = pl.pallas_call(
        kernel,
        out_shape=jax.ShapeDtypeStruct((1, B_pad), jnp.float32),
        grid=(n_blocks,),
        in_specs=[
            pl.BlockSpec((1, b_tile), lambda b: (0, b)),            # lengths
            pl.BlockSpec((N, 1), lambda b: (0, 0)),                 # priors (prob)
            pl.BlockSpec((N, N), lambda b: (0, 0)),                 # transitions (prob)
            pl.BlockSpec((T_max, N, b_tile), lambda b: (0, 0, b)),  # gathered emissions
        ],
        out_specs=pl.BlockSpec((1, b_tile), lambda b: (0, b)),
        compiler_params=pltpu.CompilerParams(
            dimension_semantics=("parallel",),
            vmem_limit_bytes=vmem_limit,
        ),
    )(T_p, prior_in, trans_p, emiss_obs)

    return out[0, :B].reshape(B, 1)


# --------- pure-JAX reference mirroring the torch module exactly ---------
def hmm_forward_ref(x, T, transitions, emissions, priors):
    log_sp = jax.nn.log_softmax(priors.astype(jnp.float32), axis=0)
    log_E = jax.nn.log_softmax(emissions.astype(jnp.float32), axis=1)
    log_A = jax.nn.log_softmax(transitions.astype(jnp.float32), axis=0)
    B, T_max = x.shape

    alpha = log_E[:, x[:, 0]].T + log_sp[None, :]
    alphas = [alpha]
    for t in range(1, T_max):
        elem = log_A[None, :, :] + alpha[:, None, :]            # (B, N_i, N_j)
        trans_out = jax.scipy.special.logsumexp(elem, axis=2)   # (B, N_i)
        alpha = log_E[:, x[:, t]].T + trans_out
        alphas.append(alpha)
    la = jnp.stack(alphas, axis=1)                              # (B, T_max, N)
    log_sums = jax.scipy.special.logsumexp(la, axis=2)          # (B, T_max)
    log_probs = jnp.take_along_axis(log_sums, (T - 1)[:, None].astype(jnp.int32), axis=1)
    return jnp.exp(log_probs)


if __name__ == "__main__":
    key = jax.random.PRNGKey(0)
    k1, k2, k3, k4, k5 = jax.random.split(key, 5)

    N = 8        # number of hidden states
    M = 16       # number of observation symbols
    B = 200      # number of observation sequences (pads to 256 -> 2 batch tiles)
    T_max = 12   # max sequence length

    # deterministic synthetic parameters (the module softmaxes them internally)
    transitions = jax.random.normal(k1, (N, N), dtype=jnp.float32)
    emissions = jax.random.normal(k2, (N, M), dtype=jnp.float32)
    priors = jax.random.normal(k3, (N,), dtype=jnp.float32)

    # observations and per-sequence lengths
    x = jax.random.randint(k4, (B, T_max), 0, M, dtype=jnp.int32)
    T = jax.random.randint(k5, (B,), 1, T_max + 1, dtype=jnp.int32)

    out = hmm_forward_pallas(x, T, transitions, emissions, priors)
    out = jax.block_until_ready(out)

    ref = hmm_forward_ref(x, T, transitions, emissions, priors)
    np.testing.assert_allclose(np.asarray(out), np.asarray(ref), rtol=2e-4, atol=1e-30)

    print("KERNEL_OK")
</pallas_src>

<mosaic_0001>
module attributes {stable_mosaic.version = 11 : i64} {
  func.func @kernel(%arg0: i32, %arg1: memref<1x128xi32, #tpu.memory_space<vmem>>, %arg2: memref<8x1xf32, #tpu.memory_space<vmem>>, %arg3: memref<8x8xf32, #tpu.memory_space<vmem>>, %arg4: memref<12x8x128xf32, #tpu.memory_space<vmem>>, %arg5: memref<1x128xf32, #tpu.memory_space<vmem>>) attributes {dimension_semantics = [#tpu.dimension_semantics<parallel>], iteration_bounds = array<i64: 2>, scalar_prefetch = 0 : i64, scratch_operands = 0 : i64, tpu.core_type = #tpu.core_type<tc>, window_params = [{transform_indices = @transform_0, window_bounds = array<i64: 1, 128>}, {pipeline_mode = #tpu.pipeline_mode<synchronous>, transform_indices = @transform_1, window_bounds = array<i64: 8, 1>}, {pipeline_mode = #tpu.pipeline_mode<synchronous>, transform_indices = @transform_2, window_bounds = array<i64: 8, 8>}, {transform_indices = @transform_3, window_bounds = array<i64: 12, 8, 128>}, {transform_indices = @transform_4, window_bounds = array<i64: 1, 128>}]} {
    %c0 = arith.constant 0 : index
    %c0_0 = arith.constant 0 : index
    %0 = vector.load %arg1[%c0, %c0_0] : memref<1x128xi32, #tpu.memory_space<vmem>>, vector<1x128xi32>
    %c0_1 = arith.constant 0 : index
    %c0_2 = arith.constant 0 : index
    %1 = vector.load %arg3[%c0_1, %c0_2] : memref<8x8xf32, #tpu.memory_space<vmem>>, vector<8x8xf32>
    %2 = vector.extract_strided_slice %1 {offsets = [0, 0], sizes = [8, 1], strides = [1, 1]} : vector<8x8xf32> to vector<8x1xf32>
    %3 = vector.shape_cast %2 : vector<8x1xf32> to vector<8x1xf32>
    %4 = vector.broadcast %3 : vector<8x1xf32> to vector<8x128xf32>
    %5 = vector.extract_strided_slice %1 {offsets = [0, 1], sizes = [8, 1], strides = [1, 1]} : vector<8x8xf32> to vector<8x1xf32>
    %6 = vector.shape_cast %5 : vector<8x1xf32> to vector<8x1xf32>
    %7 = vector.broadcast %6 : vector<8x1xf32> to vector<8x128xf32>
    %8 = vector.extract_strided_slice %1 {offsets = [0, 2], sizes = [8, 1], strides = [1, 1]} : vector<8x8xf32> to vector<8x1xf32>
    %9 = vector.shape_cast %8 : vector<8x1xf32> to vector<8x1xf32>
    %10 = vector.broadcast %9 : vector<8x1xf32> to vector<8x128xf32>
    %11 = vector.extract_strided_slice %1 {offsets = [0, 3], sizes = [8, 1], strides = [1, 1]} : vector<8x8xf32> to vector<8x1xf32>
    %12 = vector.shape_cast %11 : vector<8x1xf32> to vector<8x1xf32>
    %13 = vector.broadcast %12 : vector<8x1xf32> to vector<8x128xf32>
    %14 = vector.extract_strided_slice %1 {offsets = [0, 4], sizes = [8, 1], strides = [1, 1]} : vector<8x8xf32> to vector<8x1xf32>
    %15 = vector.shape_cast %14 : vector<8x1xf32> to vector<8x1xf32>
    %16 = vector.broadcast %15 : vector<8x1xf32> to vector<8x128xf32>
    %17 = vector.extract_strided_slice %1 {offsets = [0, 5], sizes = [8, 1], strides = [1, 1]} : vector<8x8xf32> to vector<8x1xf32>
    %18 = vector.shape_cast %17 : vector<8x1xf32> to vector<8x1xf32>
    %19 = vector.broadcast %18 : vector<8x1xf32> to vector<8x128xf32>
    %20 = vector.extract_strided_slice %1 {offsets = [0, 6], sizes = [8, 1], strides = [1, 1]} : vector<8x8xf32> to vector<8x1xf32>
    %21 = vector.shape_cast %20 : vector<8x1xf32> to vector<8x1xf32>
    %22 = vector.broadcast %21 : vector<8x1xf32> to vector<8x128xf32>
    %23 = vector.extract_strided_slice %1 {offsets = [0, 7], sizes = [8, 1], strides = [1, 1]} : vector<8x8xf32> to vector<8x1xf32>
    %24 = vector.shape_cast %23 : vector<8x1xf32> to vector<8x1xf32>
    %25 = vector.broadcast %24 : vector<8x1xf32> to vector<8x128xf32>
    %c0_3 = arith.constant 0 : index
    %c0_4 = arith.constant 0 : index
    %c0_5 = arith.constant 0 : index
    %26 = vector.load %arg4[%c0_3, %c0_4, %c0_5] : memref<12x8x128xf32, #tpu.memory_space<vmem>>, vector<1x8x128xf32>
    %27 = vector.shape_cast %26 : vector<1x8x128xf32> to vector<8x128xf32>
    %c0_6 = arith.constant 0 : index
    %c0_7 = arith.constant 0 : index
    %28 = vector.load %arg2[%c0_6, %c0_7] : memref<8x1xf32, #tpu.memory_space<vmem>>, vector<8x1xf32>
    %29 = vector.broadcast %28 : vector<8x1xf32> to vector<8x128xf32>
    %30 = arith.mulf %27, %29 : vector<8x128xf32>
    %cst = arith.constant dense<0.000000e+00> : vector<128xf32>
    %31 = vector.multi_reduction <add>, %30, %cst [0] : vector<8x128xf32> to vector<128xf32>
    %32 = vector.shape_cast %31 : vector<128xf32> to vector<1x128xf32>
    %33 = vector.broadcast %32 : vector<1x128xf32> to vector<8x128xf32>
    %34 = arith.divf %30, %33 : vector<8x128xf32>
    %c0_i32 = arith.constant 0 : i32
    %35 = vector.broadcast %c0_i32 : i32 to vector<1x128xi32>
    %36 = arith.cmpi sgt, %0, %35 : vector<1x128xi32>
    %37 = math.log %32 : vector<1x128xf32>
    %cst_8 = arith.constant 0.000000e+00 : f32
    %38 = vector.broadcast %cst_8 : f32 to vector<1x128xf32>
    %39 = arith.select %36, %37, %38 : vector<1x128xi1>, vector<1x128xf32>
    %c1_i32 = arith.constant 1 : i32
    %40 = arith.index_cast %c1_i32 : i32 to index
    %c0_9 = arith.constant 0 : index
    %c0_10 = arith.constant 0 : index
    %41 = vector.load %arg4[%40, %c0_9, %c0_10] : memref<12x8x128xf32, #tpu.memory_space<vmem>>, vector<1x8x128xf32>
    %42 = vector.shape_cast %41 : vector<1x8x128xf32> to vector<8x128xf32>
    %43 = vector.extract_strided_slice %34 {offsets = [0, 0], sizes = [1, 128], strides = [1, 1]} : vector<8x128xf32> to vector<1x128xf32>
    %44 = vector.broadcast %43 : vector<1x128xf32> to vector<8x128xf32>
    %45 = arith.mulf %4, %44 : vector<8x128xf32>
    %46 = vector.extract_strided_slice %34 {offsets = [1, 0], sizes = [1, 128], strides = [1, 1]} : vector<8x128xf32> to vector<1x128xf32>
    %47 = vector.broadcast %46 : vector<1x128xf32> to vector<8x128xf32>
    %48 = arith.mulf %7, %47 : vector<8x128xf32>
    %49 = arith.addf %45, %48 : vector<8x128xf32>
    %50 = vector.extract_strided_slice %34 {offsets = [2, 0], sizes = [1, 128], strides = [1, 1]} : vector<8x128xf32> to vector<1x128xf32>
    %51 = vector.broadcast %50 : vector<1x128xf32> to vector<8x128xf32>
    %52 = arith.mulf %10, %51 : vector<8x128xf32>
    %53 = arith.addf %49, %52 : vector<8x128xf32>
    %54 = vector.extract_strided_slice %34 {offsets = [3, 0], sizes = [1, 128], strides = [1, 1]} : vector<8x128xf32> to vector<1x128xf32>
    %55 = vector.broadcast %54 : vector<1x128xf32> to vector<8x128xf32>
    %56 = arith.mulf %13, %55 : vector<8x128xf32>
    %57 = arith.addf %53, %56 : vector<8x128xf32>
    %58 = vector.extract_strided_slice %34 {offsets = [4, 0], sizes = [1, 128], strides = [1, 1]} : vector<8x128xf32> to vector<1x128xf32>
    %59 = vector.broadcast %58 : vector<1x128xf32> to vector<8x128xf32>
    %60 = arith.mulf %16, %59 : vector<8x128xf32>
    %61 = arith.addf %57, %60 : vector<8x128xf32>
    %62 = vector.extract_strided_slice %34 {offsets = [5, 0], sizes = [1, 128], strides = [1, 1]} : vector<8x128xf32> to vector<1x128xf32>
    %63 = vector.broadcast %62 : vector<1x128xf32> to vector<8x128xf32>
    %64 = arith.mulf %19, %63 : vector<8x128xf32>
    %65 = arith.addf %61, %64 : vector<8x128xf32>
    %66 = vector.extract_strided_slice %34 {offsets = [6, 0], sizes = [1, 128], strides = [1, 1]} : vector<8x128xf32> to vector<1x128xf32>
    %67 = vector.broadcast %66 : vector<1x128xf32> to vector<8x128xf32>
    %68 = arith.mulf %22, %67 : vector<8x128xf32>
    %69 = arith.addf %65, %68 : vector<8x128xf32>
    %70 = vector.extract_strided_slice %34 {offsets = [7, 0], sizes = [1, 128], strides = [1, 1]} : vector<8x128xf32> to vector<1x128xf32>
    %71 = vector.broadcast %70 : vector<1x128xf32> to vector<8x128xf32>
    %72 = arith.mulf %25, %71 : vector<8x128xf32>
    %73 = arith.addf %69, %72 : vector<8x128xf32>
    %74 = arith.mulf %42, %73 : vector<8x128xf32>
    %cst_11 = arith.constant dense<0.000000e+00> : vector<128xf32>
    %75 = vector.multi_reduction <add>, %74, %cst_11 [0] : vector<8x128xf32> to vector<128xf32>
    %76 = vector.shape_cast %75 : vector<128xf32> to vector<1x128xf32>
    %77 = vector.broadcast %76 : vector<1x128xf32> to vector<8x128xf32>
    %78 = arith.divf %74, %77 : vector<8x128xf32>
    %79 = vector.broadcast %c1_i32 : i32 to vector<1x128xi32>
    %80 = arith.cmpi slt, %79, %0 : vector<1x128xi32>
    %81 = math.log %76 : vector<1x128xf32>
    %82 = arith.addf %39, %81 : vector<1x128xf32>
    %83 = arith.select %80, %82, %39 : vector<1x128xi1>, vector<1x128xf32>
    %c2_i32 = arith.constant 2 : i32
    %84 = arith.index_cast %c2_i32 : i32 to index
    %c0_12 = arith.constant 0 : index
    %c0_13 = arith.constant 0 : index
    %85 = vector.load %arg4[%84, %c0_12, %c0_13] : memref<12x8x128xf32, #tpu.memory_space<vmem>>, vector<1x8x128xf32>
    %86 = vector.shape_cast %85 : vector<1x8x128xf32> to vector<8x128xf32>
    %87 = vector.extract_strided_slice %78 {offsets = [0, 0], sizes = [1, 128], strides = [1, 1]} : vector<8x128xf32> to vector<1x128xf32>
    %88 = vector.broadcast %87 : vector<1x128xf32> to vector<8x128xf32>
    %89 = arith.mulf %4, %88 : vector<8x128xf32>
    %90 = vector.extract_strided_slice %78 {offsets = [1, 0], sizes = [1, 128], strides = [1, 1]} : vector<8x128xf32> to vector<1x128xf32>
    %91 = vector.broadcast %90 : vector<1x128xf32> to vector<8x128xf32>
    %92 = arith.mulf %7, %91 : vector<8x128xf32>
    %93 = arith.addf %89, %92 : vector<8x128xf32>
    %94 = vector.extract_strided_slice %78 {offsets = [2, 0], sizes = [1, 128], strides = [1, 1]} : vector<8x128xf32> to vector<1x128xf32>
    %95 = vector.broadcast %94 : vector<1x128xf32> to vector<8x128xf32>
    %96 = arith.mulf %10, %95 : vector<8x128xf32>
    %97 = arith.addf %93, %96 : vector<8x128xf32>
    %98 = vector.extract_strided_slice %78 {offsets = [3, 0], sizes = [1, 128], strides = [1, 1]} : vector<8x128xf32> to vector<1x128xf32>
    %99 = vector.broadcast %98 : vector<1x128xf32> to vector<8x128xf32>
    %100 = arith.mulf %13, %99 : vector<8x128xf32>
    %101 = arith.addf %97, %100 : vector<8x128xf32>
    %102 = vector.extract_strided_slice %78 {offsets = [4, 0], sizes = [1, 128], strides = [1, 1]} : vector<8x128xf32> to vector<1x128xf32>
    %103 = vector.broadcast %102 : vector<1x128xf32> to vector<8x128xf32>
    %104 = arith.mulf %16, %103 : vector<8x128xf32>
    %105 = arith.addf %101, %104 : vector<8x128xf32>
    %106 = vector.extract_strided_slice %78 {offsets = [5, 0], sizes = [1, 128], strides = [1, 1]} : vector<8x128xf32> to vector<1x128xf32>
    %107 = vector.broadcast %106 : vector<1x128xf32> to vector<8x128xf32>
    %108 = arith.mulf %19, %107 : vector<8x128xf32>
    %109 = arith.addf %105, %108 : vector<8x128xf32>
    %110 = vector.extract_strided_slice %78 {offsets = [6, 0], sizes = [1, 128], strides = [1, 1]} : vector<8x128xf32> to vector<1x128xf32>
    %111 = vector.broadcast %110 : vector<1x128xf32> to vector<8x128xf32>
    %112 = arith.mulf %22, %111 : vector<8x128xf32>
    %113 = arith.addf %109, %112 : vector<8x128xf32>
    %114 = vector.extract_strided_slice %78 {offsets = [7, 0], sizes = [1, 128], strides = [1, 1]} : vector<8x128xf32> to vector<1x128xf32>
    %115 = vector.broadcast %114 : vector<1x128xf32> to vector<8x128xf32>
    %116 = arith.mulf %25, %115 : vector<8x128xf32>
    %117 = arith.addf %113, %116 : vector<8x128xf32>
    %118 = arith.mulf %86, %117 : vector<8x128xf32>
    %cst_14 = arith.constant dense<0.000000e+00> : vector<128xf32>
    %119 = vector.multi_reduction <add>, %118, %cst_14 [0] : vector<8x128xf32> to vector<128xf32>
    %120 = vector.shape_cast %119 : vector<128xf32> to vector<1x128xf32>
    %121 = vector.broadcast %120 : vector<1x128xf32> to vector<8x128xf32>
    %122 = arith.divf %118, %121 : vector<8x128xf32>
    %123 = vector.broadcast %c2_i32 : i32 to vector<1x128xi32>
    %124 = arith.cmpi slt, %123, %0 : vector<1x128xi32>
    %125 = math.log %120 : vector<1x128xf32>
    %126 = arith.addf %83, %125 : vector<1x128xf32>
    %127 = arith.select %124, %126, %83 : vector<1x128xi1>, vector<1x128xf32>
    %c3_i32 = arith.constant 3 : i32
    %128 = arith.index_cast %c3_i32 : i32 to index
    %c0_15 = arith.constant 0 : index
    %c0_16 = arith.constant 0 : index
    %129 = vector.load %arg4[%128, %c0_15, %c0_16] : memref<12x8x128xf32, #tpu.memory_space<vmem>>, vector<1x8x128xf32>
    %130 = vector.shape_cast %129 : vector<1x8x128xf32> to vector<8x128xf32>
    %131 = vector.extract_strided_slice %122 {offsets = [0, 0], sizes = [1, 128], strides = [1, 1]} : vector<8x128xf32> to vector<1x128xf32>
    %132 = vector.broadcast %131 : vector<1x128xf32> to vector<8x128xf32>
    %133 = arith.mulf %4, %132 : vector<8x128xf32>
    %134 = vector.extract_strided_slice %122 {offsets = [1, 0], sizes = [1, 128], strides = [1, 1]} : vector<8x128xf32> to vector<1x128xf32>
    %135 = vector.broadcast %134 : vector<1x128xf32> to vector<8x128xf32>
    %136 = arith.mulf %7, %135 : vector<8x128xf32>
    %137 = arith.addf %133, %136 : vector<8x128xf32>
    %138 = vector.extract_strided_slice %122 {offsets = [2, 0], sizes = [1, 128], strides = [1, 1]} : vector<8x128xf32> to vector<1x128xf32>
    %139 = vector.broadcast %138 : vector<1x128xf32> to vector<8x128xf32>
    %140 = arith.mulf %10, %139 : vector<8x128xf32>
    %141 = arith.addf %137, %140 : vector<8x128xf32>
    %142 = vector.extract_strided_slice %122 {offsets = [3, 0], sizes = [1, 128], strides = [1, 1]} : vector<8x128xf32> to vector<1x128xf32>
    %143 = vector.broadcast %142 : vector<1x128xf32> to vector<8x128xf32>
    %144 = arith.mulf %13, %143 : vector<8x128xf32>
    %145 = arith.addf %141, %144 : vector<8x128xf32>
    %146 = vector.extract_strided_slice %122 {offsets = [4, 0], sizes = [1, 128], strides = [1, 1]} : vector<8x128xf32> to vector<1x128xf32>
    %147 = vector.broadcast %146 : vector<1x128xf32> to vector<8x128xf32>
    %148 = arith.mulf %16, %147 : vector<8x128xf32>
    %149 = arith.addf %145, %148 : vector<8x128xf32>
    %150 = vector.extract_strided_slice %122 {offsets = [5, 0], sizes = [1, 128], strides = [1, 1]} : vector<8x128xf32> to vector<1x128xf32>
    %151 = vector.broadcast %150 : vector<1x128xf32> to vector<8x128xf32>
    %152 = arith.mulf %19, %151 : vector<8x128xf32>
    %153 = arith.addf %149, %152 : vector<8x128xf32>
    %154 = vector.extract_strided_slice %122 {offsets = [6, 0], sizes = [1, 128], strides = [1, 1]} : vector<8x128xf32> to vector<1x128xf32>
    %155 = vector.broadcast %154 : vector<1x128xf32> to vector<8x128xf32>
    %156 = arith.mulf %22, %155 : vector<8x128xf32>
    %157 = arith.addf %153, %156 : vector<8x128xf32>
    %158 = vector.extract_strided_slice %122 {offsets = [7, 0], sizes = [1, 128], strides = [1, 1]} : vector<8x128xf32> to vector<1x128xf32>
    %159 = vector.broadcast %158 : vector<1x128xf32> to vector<8x128xf32>
    %160 = arith.mulf %25, %159 : vector<8x128xf32>
    %161 = arith.addf %157, %160 : vector<8x128xf32>
    %162 = arith.mulf %130, %161 : vector<8x128xf32>
    %cst_17 = arith.constant dense<0.000000e+00> : vector<128xf32>
    %163 = vector.multi_reduction <add>, %162, %cst_17 [0] : vector<8x128xf32> to vector<128xf32>
    %164 = vector.shape_cast %163 : vector<128xf32> to vector<1x128xf32>
    %165 = vector.broadcast %164 : vector<1x128xf32> to vector<8x128xf32>
    %166 = arith.divf %162, %165 : vector<8x128xf32>
    %167 = vector.broadcast %c3_i32 : i32 to vector<1x128xi32>
    %168 = arith.cmpi slt, %167, %0 : vector<1x128xi32>
    %169 = math.log %164 : vector<1x128xf32>
    %170 = arith.addf %127, %169 : vector<1x128xf32>
    %171 = arith.select %168, %170, %127 : vector<1x128xi1>, vector<1x128xf32>
    %c4_i32 = arith.constant 4 : i32
    %172 = arith.index_cast %c4_i32 : i32 to index
    %c0_18 = arith.constant 0 : index
    %c0_19 = arith.constant 0 : index
    %173 = vector.load %arg4[%172, %c0_18, %c0_19] : memref<12x8x128xf32, #tpu.memory_space<vmem>>, vector<1x8x128xf32>
    %174 = vector.shape_cast %173 : vector<1x8x128xf32> to vector<8x128xf32>
    %175 = vector.extract_strided_slice %166 {offsets = [0, 0], sizes = [1, 128], strides = [1, 1]} : vector<8x128xf32> to vector<1x128xf32>
    %176 = vector.broadcast %175 : vector<1x128xf32> to vector<8x128xf32>
    %177 = arith.mulf %4, %176 : vector<8x128xf32>
    %178 = vector.extract_strided_slice %166 {offsets = [1, 0], sizes = [1, 128], strides = [1, 1]} : vector<8x128xf32> to vector<1x128xf32>
    %179 = vector.broadcast %178 : vector<1x128xf32> to vector<8x128xf32>
    %180 = arith.mulf %7, %179 : vector<8x128xf32>
    %181 = arith.addf %177, %180 : vector<8x128xf32>
    %182 = vector.extract_strided_slice %166 {offsets = [2, 0], sizes = [1, 128], strides = [1, 1]} : vector<8x128xf32> to vector<1x128xf32>
    %183 = vector.broadcast %182 : vector<1x128xf32> to vector<8x128xf32>
    %184 = arith.mulf %10, %183 : vector<8x128xf32>
    %185 = arith.addf %181, %184 : vector<8x128xf32>
    %186 = vector.extract_strided_slice %166 {offsets = [3, 0], sizes = [1, 128], strides = [1, 1]} : vector<8x128xf32> to vector<1x128xf32>
    %187 = vector.broadcast %186 : vector<1x128xf32> to vector<8x128xf32>
    %188 = arith.mulf %13, %187 : vector<8x128xf32>
    %189 = arith.addf %185, %188 : vector<8x128xf32>
    %190 = vector.extract_strided_slice %166 {offsets = [4, 0], sizes = [1, 128], strides = [1, 1]} : vector<8x128xf32> to vector<1x128xf32>
    %191 = vector.broadcast %190 : vector<1x128xf32> to vector<8x128xf32>
    %192 = arith.mulf %16, %191 : vector<8x128xf32>
    %193 = arith.addf %189, %192 : vector<8x128xf32>
    %194 = vector.extract_strided_slice %166 {offsets = [5, 0], sizes = [1, 128], strides = [1, 1]} : vector<8x128xf32> to vector<1x128xf32>
    %195 = vector.broadcast %194 : vector<1x128xf32> to vector<8x128xf32>
    %196 = arith.mulf %19, %195 : vector<8x128xf32>
    %197 = arith.addf %193, %196 : vector<8x128xf32>
    %198 = vector.extract_strided_slice %166 {offsets = [6, 0], sizes = [1, 128], strides = [1, 1]} : vector<8x128xf32> to vector<1x128xf32>
    %199 = vector.broadcast %198 : vector<1x128xf32> to vector<8x128xf32>
    %200 = arith.mulf %22, %199 : vector<8x128xf32>
    %201 = arith.addf %197, %200 : vector<8x128xf32>
    %202 = vector.extract_strided_slice %166 {offsets = [7, 0], sizes = [1, 128], strides = [1, 1]} : vector<8x128xf32> to vector<1x128xf32>
    %203 = vector.broadcast %202 : vector<1x128xf32> to vector<8x128xf32>
    %204 = arith.mulf %25, %203 : vector<8x128xf32>
    %205 = arith.addf %201, %204 : vector<8x128xf32>
    %206 = arith.mulf %174, %205 : vector<8x128xf32>
    %cst_20 = arith.constant dense<0.000000e+00> : vector<128xf32>
    %207 = vector.multi_reduction <add>, %206, %cst_20 [0] : vector<8x128xf32> to vector<128xf32>
    %208 = vector.shape_cast %207 : vector<128xf32> to vector<1x128xf32>
    %209 = vector.broadcast %208 : vector<1x128xf32> to vector<8x128xf32>
    %210 = arith.divf %206, %209 : vector<8x128xf32>
    %211 = vector.broadcast %c4_i32 : i32 to vector<1x128xi32>
    %212 = arith.cmpi slt, %211, %0 : vector<1x128xi32>
    %213 = math.log %208 : vector<1x128xf32>
    %214 = arith.addf %171, %213 : vector<1x128xf32>
    %215 = arith.select %212, %214, %171 : vector<1x128xi1>, vector<1x128xf32>
    %c5_i32 = arith.constant 5 : i32
    %216 = arith.index_cast %c5_i32 : i32 to index
    %c0_21 = arith.constant 0 : index
    %c0_22 = arith.constant 0 : index
    %217 = vector.load %arg4[%216, %c0_21, %c0_22] : memref<12x8x128xf32, #tpu.memory_space<vmem>>, vector<1x8x128xf32>
    %218 = vector.shape_cast %217 : vector<1x8x128xf32> to vector<8x128xf32>
    %219 = vector.extract_strided_slice %210 {offsets = [0, 0], sizes = [1, 128], strides = [1, 1]} : vector<8x128xf32> to vector<1x128xf32>
    %220 = vector.broadcast %219 : vector<1x128xf32> to vector<8x128xf32>
    %221 = arith.mulf %4, %220 : vector<8x128xf32>
    %222 = vector.extract_strided_slice %210 {offsets = [1, 0], sizes = [1, 128], strides = [1, 1]} : vector<8x128xf32> to vector<1x128xf32>
    %223 = vector.broadcast %222 : vector<1x128xf32> to vector<8x128xf32>
    %224 = arith.mulf %7, %223 : vector<8x128xf32>
    %225 = arith.addf %221, %224 : vector<8x128xf32>
    %226 = vector.extract_strided_slice %210 {offsets = [2, 0], sizes = [1, 128], strides = [1, 1]} : vector<8x128xf32> to vector<1x128xf32>
    %227 = vector.broadcast %226 : vector<1x128xf32> to vector<8x128xf32>
    %228 = arith.mulf %10, %227 : vector<8x128xf32>
    %229 = arith.addf %225, %228 : vector<8x128xf32>
    %230 = vector.extract_strided_slice %210 {offsets = [3, 0], sizes = [1, 128], strides = [1, 1]} : vector<8x128xf32> to vector<1x128xf32>
    %231 = vector.broadcast %230 : vector<1x128xf32> to vector<8x128xf32>
    %232 = arith.mulf %13, %231 : vector<8x128xf32>
    %233 = arith.addf %229, %232 : vector<8x128xf32>
    %234 = vector.extract_strided_slice %210 {offsets = [4, 0], sizes = [1, 128], strides = [1, 1]} : vector<8x128xf32> to vector<1x128xf32>
    %235 = vector.broadcast %234 : vector<1x128xf32> to vector<8x128xf32>
    %236 = arith.mulf %16, %235 : vector<8x128xf32>
    %237 = arith.addf %233, %236 : vector<8x128xf32>
    %238 = vector.extract_strided_slice %210 {offsets = [5, 0], sizes = [1, 128], strides = [1, 1]} : vector<8x128xf32> to vector<1x128xf32>
    %239 = vector.broadcast %238 : vector<1x128xf32> to vector<8x128xf32>
    %240 = arith.mulf %19, %239 : vector<8x128xf32>
    %241 = arith.addf %237, %240 : vector<8x128xf32>
    %242 = vector.extract_strided_slice %210 {offsets = [6, 0], sizes = [1, 128], strides = [1, 1]} : vector<8x128xf32> to vector<1x128xf32>
    %243 = vector.broadcast %242 : vector<1x128xf32> to vector<8x128xf32>
    %244 = arith.mulf %22, %243 : vector<8x128xf32>
    %245 = arith.addf %241, %244 : vector<8x128xf32>
    %246 = vector.extract_strided_slice %210 {offsets = [7, 0], sizes = [1, 128], strides = [1, 1]} : vector<8x128xf32> to vector<1x128xf32>
    %247 = vector.broadcast %246 : vector<1x128xf32> to vector<8x128xf32>
    %248 = arith.mulf %25, %247 : vector<8x128xf32>
    %249 = arith.addf %245, %248 : vector<8x128xf32>
    %250 = arith.mulf %218, %249 : vector<8x128xf32>
    %cst_23 = arith.constant dense<0.000000e+00> : vector<128xf32>
    %251 = vector.multi_reduction <add>, %250, %cst_23 [0] : vector<8x128xf32> to vector<128xf32>
    %252 = vector.shape_cast %251 : vector<128xf32> to vector<1x128xf32>
    %253 = vector.broadcast %252 : vector<1x128xf32> to vector<8x128xf32>
    %254 = arith.divf %250, %253 : vector<8x128xf32>
    %255 = vector.broadcast %c5_i32 : i32 to vector<1x128xi32>
    %256 = arith.cmpi slt, %255, %0 : vector<1x128xi32>
    %257 = math.log %252 : vector<1x128xf32>
    %258 = arith.addf %215, %257 : vector<1x128xf32>
    %259 = arith.select %256, %258, %215 : vector<1x128xi1>, vector<1x128xf32>
    %c6_i32 = arith.constant 6 : i32
    %260 = arith.index_cast %c6_i32 : i32 to index
    %c0_24 = arith.constant 0 : index
    %c0_25 = arith.constant 0 : index
    %261 = vector.load %arg4[%260, %c0_24, %c0_25] : memref<12x8x128xf32, #tpu.memory_space<vmem>>, vector<1x8x128xf32>
    %262 = vector.shape_cast %261 : vector<1x8x128xf32> to vector<8x128xf32>
    %263 = vector.extract_strided_slice %254 {offsets = [0, 0], sizes = [1, 128], strides = [1, 1]} : vector<8x128xf32> to vector<1x128xf32>
    %264 = vector.broadcast %263 : vector<1x128xf32> to vector<8x128xf32>
    %265 = arith.mulf %4, %264 : vector<8x128xf32>
    %266 = vector.extract_strided_slice %254 {offsets = [1, 0], sizes = [1, 128], strides = [1, 1]} : vector<8x128xf32> to vector<1x128xf32>
    %267 = vector.broadcast %266 : vector<1x128xf32> to vector<8x128xf32>
    %268 = arith.mulf %7, %267 : vector<8x128xf32>
    %269 = arith.addf %265, %268 : vector<8x128xf32>
    %270 = vector.extract_strided_slice %254 {offsets = [2, 0], sizes = [1, 128], strides = [1, 1]} : vector<8x128xf32> to vector<1x128xf32>
    %271 = vector.broadcast %270 : vector<1x128xf32> to vector<8x128xf32>
    %272 = arith.mulf %10, %271 : vector<8x128xf32>
    %273 = arith.addf %269, %272 : vector<8x128xf32>
    %274 = vector.extract_strided_slice %254 {offsets = [3, 0], sizes = [1, 128], strides = [1, 1]} : vector<8x128xf32> to vector<1x128xf32>
    %275 = vector.broadcast %274 : vector<1x128xf32> to vector<8x128xf32>
    %276 = arith.mulf %13, %275 : vector<8x128xf32>
    %277 = arith.addf %273, %276 : vector<8x128xf32>
    %278 = vector.extract_strided_slice %254 {offsets = [4, 0], sizes = [1, 128], strides = [1, 1]} : vector<8x128xf32> to vector<1x128xf32>
    %279 = vector.broadcast %278 : vector<1x128xf32> to vector<8x128xf32>
    %280 = arith.mulf %16, %279 : vector<8x128xf32>
    %281 = arith.addf %277, %280 : vector<8x128xf32>
    %282 = vector.extract_strided_slice %254 {offsets = [5, 0], sizes = [1, 128], strides = [1, 1]} : vector<8x128xf32> to vector<1x128xf32>
    %283 = vector.broadcast %282 : vector<1x128xf32> to vector<8x128xf32>
    %284 = arith.mulf %19, %283 : vector<8x128xf32>
    %285 = arith.addf %281, %284 : vector<8x128xf32>
    %286 = vector.extract_strided_slice %254 {offsets = [6, 0], sizes = [1, 128], strides = [1, 1]} : vector<8x128xf32> to vector<1x128xf32>
    %287 = vector.broadcast %286 : vector<1x128xf32> to vector<8x128xf32>
    %288 = arith.mulf %22, %287 : vector<8x128xf32>
    %289 = arith.addf %285, %288 : vector<8x128xf32>
    %290 = vector.extract_strided_slice %254 {offsets = [7, 0], sizes = [1, 128], strides = [1, 1]} : vector<8x128xf32> to vector<1x128xf32>
    %291 = vector.broadcast %290 : vector<1x128xf32> to vector<8x128xf32>
    %292 = arith.mulf %25, %291 : vector<8x128xf32>
    %293 = arith.addf %289, %292 : vector<8x128xf32>
    %294 = arith.mulf %262, %293 : vector<8x128xf32>
    %cst_26 = arith.constant dense<0.000000e+00> : vector<128xf32>
    %295 = vector.multi_reduction <add>, %294, %cst_26 [0] : vector<8x128xf32> to vector<128xf32>
    %296 = vector.shape_cast %295 : vector<128xf32> to vector<1x128xf32>
    %297 = vector.broadcast %296 : vector<1x128xf32> to vector<8x128xf32>
    %298 = arith.divf %294, %297 : vector<8x128xf32>
    %299 = vector.broadcast %c6_i32 : i32 to vector<1x128xi32>
    %300 = arith.cmpi slt, %299, %0 : vector<1x128xi32>
    %301 = math.log %296 : vector<1x128xf32>
    %302 = arith.addf %259, %301 : vector<1x128xf32>
    %303 = arith.select %300, %302, %259 : vector<1x128xi1>, vector<1x128xf32>
    %c7_i32 = arith.constant 7 : i32
    %304 = arith.index_cast %c7_i32 : i32 to index
    %c0_27 = arith.constant 0 : index
    %c0_28 = arith.constant 0 : index
    %305 = vector.load %arg4[%304, %c0_27, %c0_28] : memref<12x8x128xf32, #tpu.memory_space<vmem>>, vector<1x8x128xf32>
    %306 = vector.shape_cast %305 : vector<1x8x128xf32> to vector<8x128xf32>
    %307 = vector.extract_strided_slice %298 {offsets = [0, 0], sizes = [1, 128], strides = [1, 1]} : vector<8x128xf32> to vector<1x128xf32>
    %308 = vector.broadcast %307 : vector<1x128xf32> to vector<8x128xf32>
    %309 = arith.mulf %4, %308 : vector<8x128xf32>
    %310 = vector.extract_strided_slice %298 {offsets = [1, 0], sizes = [1, 128], strides = [1, 1]} : vector<8x128xf32> to vector<1x128xf32>
    %311 = vector.broadcast %310 : vector<1x128xf32> to vector<8x128xf32>
    %312 = arith.mulf %7, %311 : vector<8x128xf32>
    %313 = arith.addf %309, %312 : vector<8x128xf32>
    %314 = vector.extract_strided_slice %298 {offsets = [2, 0], sizes = [1, 128], strides = [1, 1]} : vector<8x128xf32> to vector<1x128xf32>
    %315 = vector.broadcast %314 : vector<1x128xf32> to vector<8x128xf32>
    %316 = arith.mulf %10, %315 : vector<8x128xf32>
    %317 = arith.addf %313, %316 : vector<8x128xf32>
    %318 = vector.extract_strided_slice %298 {offsets = [3, 0], sizes = [1, 128], strides = [1, 1]} : vector<8x128xf32> to vector<1x128xf32>
    %319 = vector.broadcast %318 : vector<1x128xf32> to vector<8x128xf32>
    %320 = arith.mulf %13, %319 : vector<8x128xf32>
    %321 = arith.addf %317, %320 : vector<8x128xf32>
    %322 = vector.extract_strided_slice %298 {offsets = [4, 0], sizes = [1, 128], strides = [1, 1]} : vector<8x128xf32> to vector<1x128xf32>
    %323 = vector.broadcast %322 : vector<1x128xf32> to vector<8x128xf32>
    %324 = arith.mulf %16, %323 : vector<8x128xf32>
    %325 = arith.addf %321, %324 : vector<8x128xf32>
    %326 = vector.extract_strided_slice %298 {offsets = [5, 0], sizes = [1, 128], strides = [1, 1]} : vector<8x128xf32> to vector<1x128xf32>
    %327 = vector.broadcast %326 : vector<1x128xf32> to vector<8x128xf32>
    %328 = arith.mulf %19, %327 : vector<8x128xf32>
    %329 = arith.addf %325, %328 : vector<8x128xf32>
    %330 = vector.extract_strided_slice %298 {offsets = [6, 0], sizes = [1, 128], strides = [1, 1]} : vector<8x128xf32> to vector<1x128xf32>
    %331 = vector.broadcast %330 : vector<1x128xf32> to vector<8x128xf32>
    %332 = arith.mulf %22, %331 : vector<8x128xf32>
    %333 = arith.addf %329, %332 : vector<8x128xf32>
    %334 = vector.extract_strided_slice %298 {offsets = [7, 0], sizes = [1, 128], strides = [1, 1]} : vector<8x128xf32> to vector<1x128xf32>
    %335 = vector.broadcast %334 : vector<1x128xf32> to vector<8x128xf32>
    %336 = arith.mulf %25, %335 : vector<8x128xf32>
    %337 = arith.addf %333, %336 : vector<8x128xf32>
    %338 = arith.mulf %306, %337 : vector<8x128xf32>
    %cst_29 = arith.constant dense<0.000000e+00> : vector<128xf32>
    %339 = vector.multi_reduction <add>, %338, %cst_29 [0] : vector<8x128xf32> to vector<128xf32>
    %340 = vector.shape_cast %339 : vector<128xf32> to vector<1x128xf32>
    %341 = vector.broadcast %340 : vector<1x128xf32> to vector<8x128xf32>
    %342 = arith.divf %338, %341 : vector<8x128xf32>
    %343 = vector.broadcast %c7_i32 : i32 to vector<1x128xi32>
    %344 = arith.cmpi slt, %343, %0 : vector<1x128xi32>
    %345 = math.log %340 : vector<1x128xf32>
    %346 = arith.addf %303, %345 : vector<1x128xf32>
    %347 = arith.select %344, %346, %303 : vector<1x128xi1>, vector<1x128xf32>
    %c8_i32 = arith.constant 8 : i32
    %348 = arith.index_cast %c8_i32 : i32 to index
    %c0_30 = arith.constant 0 : index
    %c0_31 = arith.constant 0 : index
    %349 = vector.load %arg4[%348, %c0_30, %c0_31] : memref<12x8x128xf32, #tpu.memory_space<vmem>>, vector<1x8x128xf32>
    %350 = vector.shape_cast %349 : vector<1x8x128xf32> to vector<8x128xf32>
    %351 = vector.extract_strided_slice %342 {offsets = [0, 0], sizes = [1, 128], strides = [1, 1]} : vector<8x128xf32> to vector<1x128xf32>
    %352 = vector.broadcast %351 : vector<1x128xf32> to vector<8x128xf32>
    %353 = arith.mulf %4, %352 : vector<8x128xf32>
    %354 = vector.extract_strided_slice %342 {offsets = [1, 0], sizes = [1, 128], strides = [1, 1]} : vector<8x128xf32> to vector<1x128xf32>
    %355 = vector.broadcast %354 : vector<1x128xf32> to vector<8x128xf32>
    %356 = arith.mulf %7, %355 : vector<8x128xf32>
    %357 = arith.addf %353, %356 : vector<8x128xf32>
    %358 = vector.extract_strided_slice %342 {offsets = [2, 0], sizes = [1, 128], strides = [1, 1]} : vector<8x128xf32> to vector<1x128xf32>
    %359 = vector.broadcast %358 : vector<1x128xf32> to vector<8x128xf32>
    %360 = arith.mulf %10, %359 : vector<8x128xf32>
    %361 = arith.addf %357, %360 : vector<8x128xf32>
    %362 = vector.extract_strided_slice %342 {offsets = [3, 0], sizes = [1, 128], strides = [1, 1]} : vector<8x128xf32> to vector<1x128xf32>
    %363 = vector.broadcast %362 : vector<1x128xf32> to vector<8x128xf32>
    %364 = arith.mulf %13, %363 : vector<8x128xf32>
    %365 = arith.addf %361, %364 : vector<8x128xf32>
    %366 = vector.extract_strided_slice %342 {offsets = [4, 0], sizes = [1, 128], strides = [1, 1]} : vector<8x128xf32> to vector<1x128xf32>
    %367 = vector.broadcast %366 : vector<1x128xf32> to vector<8x128xf32>
    %368 = arith.mulf %16, %367 : vector<8x128xf32>
    %369 = arith.addf %365, %368 : vector<8x128xf32>
    %370 = vector.extract_strided_slice %342 {offsets = [5, 0], sizes = [1, 128], strides = [1, 1]} : vector<8x128xf32> to vector<1x128xf32>
    %371 = vector.broadcast %370 : vector<1x128xf32> to vector<8x128xf32>
    %372 = arith.mulf %19, %371 : vector<8x128xf32>
    %373 = arith.addf %369, %372 : vector<8x128xf32>
    %374 = vector.extract_strided_slice %342 {offsets = [6, 0], sizes = [1, 128], strides = [1, 1]} : vector<8x128xf32> to vector<1x128xf32>
    %375 = vector.broadcast %374 : vector<1x128xf32> to vector<8x128xf32>
    %376 = arith.mulf %22, %375 : vector<8x128xf32>
    %377 = arith.addf %373, %376 : vector<8x128xf32>
    %378 = vector.extract_strided_slice %342 {offsets = [7, 0], sizes = [1, 128], strides = [1, 1]} : vector<8x128xf32> to vector<1x128xf32>
    %379 = vector.broadcast %378 : vector<1x128xf32> to vector<8x128xf32>
    %380 = arith.mulf %25, %379 : vector<8x128xf32>
    %381 = arith.addf %377, %380 : vector<8x128xf32>
    %382 = arith.mulf %350, %381 : vector<8x128xf32>
    %cst_32 = arith.constant dense<0.000000e+00> : vector<128xf32>
    %383 = vector.multi_reduction <add>, %382, %cst_32 [0] : vector<8x128xf32> to vector<128xf32>
    %384 = vector.shape_cast %383 : vector<128xf32> to vector<1x128xf32>
    %385 = vector.broadcast %384 : vector<1x128xf32> to vector<8x128xf32>
    %386 = arith.divf %382, %385 : vector<8x128xf32>
    %387 = vector.broadcast %c8_i32 : i32 to vector<1x128xi32>
    %388 = arith.cmpi slt, %387, %0 : vector<1x128xi32>
    %389 = math.log %384 : vector<1x128xf32>
    %390 = arith.addf %347, %389 : vector<1x128xf32>
    %391 = arith.select %388, %390, %347 : vector<1x128xi1>, vector<1x128xf32>
    %c9_i32 = arith.constant 9 : i32
    %392 = arith.index_cast %c9_i32 : i32 to index
    %c0_33 = arith.constant 0 : index
    %c0_34 = arith.constant 0 : index
    %393 = vector.load %arg4[%392, %c0_33, %c0_34] : memref<12x8x128xf32, #tpu.memory_space<vmem>>, vector<1x8x128xf32>
    %394 = vector.shape_cast %393 : vector<1x8x128xf32> to vector<8x128xf32>
    %395 = vector.extract_strided_slice %386 {offsets = [0, 0], sizes = [1, 128], strides = [1, 1]} : vector<8x128xf32> to vector<1x128xf32>
    %396 = vector.broadcast %395 : vector<1x128xf32> to vector<8x128xf32>
    %397 = arith.mulf %4, %396 : vector<8x128xf32>
    %398 = vector.extract_strided_slice %386 {offsets = [1, 0], sizes = [1, 128], strides = [1, 1]} : vector<8x128xf32> to vector<1x128xf32>
    %399 = vector.broadcast %398 : vector<1x128xf32> to vector<8x128xf32>
    %400 = arith.mulf %7, %399 : vector<8x128xf32>
    %401 = arith.addf %397, %400 : vector<8x128xf32>
    %402 = vector.extract_strided_slice %386 {offsets = [2, 0], sizes = [1, 128], strides = [1, 1]} : vector<8x128xf32> to vector<1x128xf32>
    %403 = vector.broadcast %402 : vector<1x128xf32> to vector<8x128xf32>
    %404 = arith.mulf %10, %403 : vector<8x128xf32>
    %405 = arith.addf %401, %404 : vector<8x128xf32>
    %406 = vector.extract_strided_slice %386 {offsets = [3, 0], sizes = [1, 128], strides = [1, 1]} : vector<8x128xf32> to vector<1x128xf32>
    %407 = vector.broadcast %406 : vector<1x128xf32> to vector<8x128xf32>
    %408 = arith.mulf %13, %407 : vector<8x128xf32>
    %409 = arith.addf %405, %408 : vector<8x128xf32>
    %410 = vector.extract_strided_slice %386 {offsets = [4, 0], sizes = [1, 128], strides = [1, 1]} : vector<8x128xf32> to vector<1x128xf32>
    %411 = vector.broadcast %410 : vector<1x128xf32> to vector<8x128xf32>
    %412 = arith.mulf %16, %411 : vector<8x128xf32>
    %413 = arith.addf %409, %412 : vector<8x128xf32>
    %414 = vector.extract_strided_slice %386 {offsets = [5, 0], sizes = [1, 128], strides = [1, 1]} : vector<8x128xf32> to vector<1x128xf32>
    %415 = vector.broadcast %414 : vector<1x128xf32> to vector<8x128xf32>
    %416 = arith.mulf %19, %415 : vector<8x128xf32>
    %417 = arith.addf %413, %416 : vector<8x128xf32>
    %418 = vector.extract_strided_slice %386 {offsets = [6, 0], sizes = [1, 128], strides = [1, 1]} : vector<8x128xf32> to vector<1x128xf32>
    %419 = vector.broadcast %418 : vector<1x128xf32> to vector<8x128xf32>
    %420 = arith.mulf %22, %419 : vector<8x128xf32>
    %421 = arith.addf %417, %420 : vector<8x128xf32>
    %422 = vector.extract_strided_slice %386 {offsets = [7, 0], sizes = [1, 128], strides = [1, 1]} : vector<8x128xf32> to vector<1x128xf32>
    %423 = vector.broadcast %422 : vector<1x128xf32> to vector<8x128xf32>
    %424 = arith.mulf %25, %423 : vector<8x128xf32>
    %425 = arith.addf %421, %424 : vector<8x128xf32>
    %426 = arith.mulf %394, %425 : vector<8x128xf32>
    %cst_35 = arith.constant dense<0.000000e+00> : vector<128xf32>
    %427 = vector.multi_reduction <add>, %426, %cst_35 [0] : vector<8x128xf32> to vector<128xf32>
    %428 = vector.shape_cast %427 : vector<128xf32> to vector<1x128xf32>
    %429 = vector.broadcast %428 : vector<1x128xf32> to vector<8x128xf32>
    %430 = arith.divf %426, %429 : vector<8x128xf32>
    %431 = vector.broadcast %c9_i32 : i32 to vector<1x128xi32>
    %432 = arith.cmpi slt, %431, %0 : vector<1x128xi32>
    %433 = math.log %428 : vector<1x128xf32>
    %434 = arith.addf %391, %433 : vector<1x128xf32>
    %435 = arith.select %432, %434, %391 : vector<1x128xi1>, vector<1x128xf32>
    %c10_i32 = arith.constant 10 : i32
    %436 = arith.index_cast %c10_i32 : i32 to index
    %c0_36 = arith.constant 0 : index
    %c0_37 = arith.constant 0 : index
    %437 = vector.load %arg4[%436, %c0_36, %c0_37] : memref<12x8x128xf32, #tpu.memory_space<vmem>>, vector<1x8x128xf32>
    %438 = vector.shape_cast %437 : vector<1x8x128xf32> to vector<8x128xf32>
    %439 = vector.extract_strided_slice %430 {offsets = [0, 0], sizes = [1, 128], strides = [1, 1]} : vector<8x128xf32> to vector<1x128xf32>
    %440 = vector.broadcast %439 : vector<1x128xf32> to vector<8x128xf32>
    %441 = arith.mulf %4, %440 : vector<8x128xf32>
    %442 = vector.extract_strided_slice %430 {offsets = [1, 0], sizes = [1, 128], strides = [1, 1]} : vector<8x128xf32> to vector<1x128xf32>
    %443 = vector.broadcast %442 : vector<1x128xf32> to vector<8x128xf32>
    %444 = arith.mulf %7, %443 : vector<8x128xf32>
    %445 = arith.addf %441, %444 : vector<8x128xf32>
    %446 = vector.extract_strided_slice %430 {offsets = [2, 0], sizes = [1, 128], strides = [1, 1]} : vector<8x128xf32> to vector<1x128xf32>
    %447 = vector.broadcast %446 : vector<1x128xf32> to vector<8x128xf32>
    %448 = arith.mulf %10, %447 : vector<8x128xf32>
    %449 = arith.addf %445, %448 : vector<8x128xf32>
    %450 = vector.extract_strided_slice %430 {offsets = [3, 0], sizes = [1, 128], strides = [1, 1]} : vector<8x128xf32> to vector<1x128xf32>
    %451 = vector.broadcast %450 : vector<1x128xf32> to vector<8x128xf32>
    %452 = arith.mulf %13, %451 : vector<8x128xf32>
    %453 = arith.addf %449, %452 : vector<8x128xf32>
    %454 = vector.extract_strided_slice %430 {offsets = [4, 0], sizes = [1, 128], strides = [1, 1]} : vector<8x128xf32> to vector<1x128xf32>
    %455 = vector.broadcast %454 : vector<1x128xf32> to vector<8x128xf32>
    %456 = arith.mulf %16, %455 : vector<8x128xf32>
    %457 = arith.addf %453, %456 : vector<8x128xf32>
    %458 = vector.extract_strided_slice %430 {offsets = [5, 0], sizes = [1, 128], strides = [1, 1]} : vector<8x128xf32> to vector<1x128xf32>
    %459 = vector.broadcast %458 : vector<1x128xf32> to vector<8x128xf32>
    %460 = arith.mulf %19, %459 : vector<8x128xf32>
    %461 = arith.addf %457, %460 : vector<8x128xf32>
    %462 = vector.extract_strided_slice %430 {offsets = [6, 0], sizes = [1, 128], strides = [1, 1]} : vector<8x128xf32> to vector<1x128xf32>
    %463 = vector.broadcast %462 : vector<1x128xf32> to vector<8x128xf32>
    %464 = arith.mulf %22, %463 : vector<8x128xf32>
    %465 = arith.addf %461, %464 : vector<8x128xf32>
    %466 = vector.extract_strided_slice %430 {offsets = [7, 0], sizes = [1, 128], strides = [1, 1]} : vector<8x128xf32> to vector<1x128xf32>
    %467 = vector.broadcast %466 : vector<1x128xf32> to vector<8x128xf32>
    %468 = arith.mulf %25, %467 : vector<8x128xf32>
    %469 = arith.addf %465, %468 : vector<8x128xf32>
    %470 = arith.mulf %438, %469 : vector<8x128xf32>
    %cst_38 = arith.constant dense<0.000000e+00> : vector<128xf32>
    %471 = vector.multi_reduction <add>, %470, %cst_38 [0] : vector<8x128xf32> to vector<128xf32>
    %472 = vector.shape_cast %471 : vector<128xf32> to vector<1x128xf32>
    %473 = vector.broadcast %472 : vector<1x128xf32> to vector<8x128xf32>
    %474 = arith.divf %470, %473 : vector<8x128xf32>
    %475 = vector.broadcast %c10_i32 : i32 to vector<1x128xi32>
    %476 = arith.cmpi slt, %475, %0 : vector<1x128xi32>
    %477 = math.log %472 : vector<1x128xf32>
    %478 = arith.addf %435, %477 : vector<1x128xf32>
    %479 = arith.select %476, %478, %435 : vector<1x128xi1>, vector<1x128xf32>
    %c11_i32 = arith.constant 11 : i32
    %480 = arith.index_cast %c11_i32 : i32 to index
    %c0_39 = arith.constant 0 : index
    %c0_40 = arith.constant 0 : index
    %481 = vector.load %arg4[%480, %c0_39, %c0_40] : memref<12x8x128xf32, #tpu.memory_space<vmem>>, vector<1x8x128xf32>
    %482 = vector.shape_cast %481 : vector<1x8x128xf32> to vector<8x128xf32>
    %483 = vector.extract_strided_slice %474 {offsets = [0, 0], sizes = [1, 128], strides = [1, 1]} : vector<8x128xf32> to vector<1x128xf32>
    %484 = vector.broadcast %483 : vector<1x128xf32> to vector<8x128xf32>
    %485 = arith.mulf %4, %484 : vector<8x128xf32>
    %486 = vector.extract_strided_slice %474 {offsets = [1, 0], sizes = [1, 128], strides = [1, 1]} : vector<8x128xf32> to vector<1x128xf32>
    %487 = vector.broadcast %486 : vector<1x128xf32> to vector<8x128xf32>
    %488 = arith.mulf %7, %487 : vector<8x128xf32>
    %489 = arith.addf %485, %488 : vector<8x128xf32>
    %490 = vector.extract_strided_slice %474 {offsets = [2, 0], sizes = [1, 128], strides = [1, 1]} : vector<8x128xf32> to vector<1x128xf32>
    %491 = vector.broadcast %490 : vector<1x128xf32> to vector<8x128xf32>
    %492 = arith.mulf %10, %491 : vector<8x128xf32>
    %493 = arith.addf %489, %492 : vector<8x128xf32>
    %494 = vector.extract_strided_slice %474 {offsets = [3, 0], sizes = [1, 128], strides = [1, 1]} : vector<8x128xf32> to vector<1x128xf32>
    %495 = vector.broadcast %494 : vector<1x128xf32> to vector<8x128xf32>
    %496 = arith.mulf %13, %495 : vector<8x128xf32>
    %497 = arith.addf %493, %496 : vector<8x128xf32>
    %498 = vector.extract_strided_slice %474 {offsets = [4, 0], sizes = [1, 128], strides = [1, 1]} : vector<8x128xf32> to vector<1x128xf32>
    %499 = vector.broadcast %498 : vector<1x128xf32> to vector<8x128xf32>
    %500 = arith.mulf %16, %499 : vector<8x128xf32>
    %501 = arith.addf %497, %500 : vector<8x128xf32>
    %502 = vector.extract_strided_slice %474 {offsets = [5, 0], sizes = [1, 128], strides = [1, 1]} : vector<8x128xf32> to vector<1x128xf32>
    %503 = vector.broadcast %502 : vector<1x128xf32> to vector<8x128xf32>
    %504 = arith.mulf %19, %503 : vector<8x128xf32>
    %505 = arith.addf %501, %504 : vector<8x128xf32>
    %506 = vector.extract_strided_slice %474 {offsets = [6, 0], sizes = [1, 128], strides = [1, 1]} : vector<8x128xf32> to vector<1x128xf32>
    %507 = vector.broadcast %506 : vector<1x128xf32> to vector<8x128xf32>
    %508 = arith.mulf %22, %507 : vector<8x128xf32>
    %509 = arith.addf %505, %508 : vector<8x128xf32>
    %510 = vector.extract_strided_slice %474 {offsets = [7, 0], sizes = [1, 128], strides = [1, 1]} : vector<8x128xf32> to vector<1x128xf32>
    %511 = vector.broadcast %510 : vector<1x128xf32> to vector<8x128xf32>
    %512 = arith.mulf %25, %511 : vector<8x128xf32>
    %513 = arith.addf %509, %512 : vector<8x128xf32>
    %514 = arith.mulf %482, %513 : vector<8x128xf32>
    %cst_41 = arith.constant dense<0.000000e+00> : vector<128xf32>
    %515 = vector.multi_reduction <add>, %514, %cst_41 [0] : vector<8x128xf32> to vector<128xf32>
    %516 = vector.shape_cast %515 : vector<128xf32> to vector<1x128xf32>
    %517 = vector.broadcast %516 : vector<1x128xf32> to vector<8x128xf32>
    %518 = arith.divf %514, %517 : vector<8x128xf32>
    %519 = vector.broadcast %c11_i32 : i32 to vector<1x128xi32>
    %520 = arith.cmpi slt, %519, %0 : vector<1x128xi32>
    %521 = math.log %516 : vector<1x128xf32>
    %522 = arith.addf %479, %521 : vector<1x128xf32>
    %523 = arith.select %520, %522, %479 : vector<1x128xi1>, vector<1x128xf32>
    %c11_i32_42 = arith.constant 11 : i32
    %524 = math.exp %523 : vector<1x128xf32>
    %c0_43 = arith.constant 0 : index
    %c0_44 = arith.constant 0 : index
    %525 = vector.load %arg5[%c0_43, %c0_44] : memref<1x128xf32, #tpu.memory_space<vmem>>, vector<1x128xf32>
    tpu.vector_store %arg5[%c0_43, %c0_44], %524 {strides = array<i32>} : memref<1x128xf32, #tpu.memory_space<vmem>>, vector<1x128xf32>,
    return
  }
  func.func @transform_0(%arg0: i32) -> (i32, i32) {
    %c0_i32 = arith.constant 0 : i32
    %c0_i32_0 = arith.constant 0 : i32
    return %c0_i32, %arg0 : i32, i32
  }
  func.func @transform_1(%arg0: i32) -> (i32, i32) {
    %c0_i32 = arith.constant 0 : i32
    %c0_i32_0 = arith.constant 0 : i32
    %c0_i32_1 = arith.constant 0 : i32
    return %c0_i32, %c0_i32_0 : i32, i32
  }
  func.func @transform_2(%arg0: i32) -> (i32, i32) {
    %c0_i32 = arith.constant 0 : i32
    %c0_i32_0 = arith.constant 0 : i32
    %c0_i32_1 = arith.constant 0 : i32
    return %c0_i32, %c0_i32_0 : i32, i32
  }
  func.func @transform_3(%arg0: i32) -> (i32, i32, i32) {
    %c0_i32 = arith.constant 0 : i32
    %c0_i32_0 = arith.constant 0 : i32
    %c0_i32_1 = arith.constant 0 : i32
    return %c0_i32, %c0_i32_0, %arg0 : i32, i32, i32
  }
  func.func @transform_4(%arg0: i32) -> (i32, i32) {
    %c0_i32 = arith.constant 0 : i32
    %c0_i32_0 = arith.constant 0 : i32
    return %c0_i32, %arg0 : i32, i32
  }
}

</mosaic_0001>

<llo_original>
// kernel: tpu_custom_call.1
$region0: #{tpu_custom_call.1}
  #allocation0 [shape = 'u32[]', space=smem, size = 0x4, offset = 0x4, fixed_abs, tag = 'smem constant byte address 0x4 - core index']
  #allocation1 [shape = 'u32[144,128]{1,0:T(1,128)}', space=vmem, size = 0x12000, scoped, tag = 'internal scratch']
  %s0 = inlined_call_operand.vmem [shape: s32[1,256], index: 0, kind: input, shape index: {}]
  %s1 = inlined_call_operand.vmem [shape: f32[8,1], index: 1, kind: input, shape index: {}]
  %s2 = inlined_call_operand.vmem [shape: f32[8,8], index: 2, kind: input, shape index: {}]
  %s3 = inlined_call_operand.hbm [shape: f32[12,8,256], index: 3, kind: input, shape index: {}]
  %s4 = inlined_call_operand.hbm [shape: f32[1,256], index: 4, kind: output, shape index: {}]
  %s5 = sld [smem:[#allocation0]]
  $region53: #{tpu_custom_call.1} parent=0
    _
  %s7 = ssub.s32 1, %s5
  %s8 = scalar_select 0, %s7, %s5
  $region1: #{tpu_custom_call.1} parent=0
    #allocation2 [shape = 'u8[98304]{0}', space=vmem, size = 0x18000, scoped, tag = 'input window, operand 3']
    #allocation3 [shape = 's32[2]{0}', space=sflag, size = 0x8, scoped, tag = 'scoped memory for tpu_custom_call.1']
    #allocation4 [shape = 's32[2]{0}', space=sflag, size = 0x8, scoped, tag = 'scoped memory for tpu_custom_call.1']
    #allocation5 [shape = 'u8[1024]{0}', space=vmem, size = 0x400, scoped, tag = 'output window, operand 0']
    %9 = vsyncpa [#allocation3], 0
    %s10 = scalar_lea.sflag [#allocation3], 1
    %11 = vsyncpa %s10, 0
    %12 = vsyncpa [#allocation4], 0
    %s13 = scalar_lea.sflag [#allocation4], 1
    %14 = vsyncpa %s13, 0
    loop: start=0, step=1, limit=4
    $region2: #{tpu_custom_call.1} parent=1 // loop_pre_header
      _
    $region3: #{tpu_custom_call.1} parent=1 // loop_header
      %s16 = sphi 0, %s20
      %p17 = scmp.ge.s32.totalorder %s16, 4
      %s26 = sphi 0, %s28
      %s29 = sphi 0, %s26
      %s30 = sphi 0, %s29
      %s46 = sphi 0, %s30
      %s50 = sphi 0, %s50
      %s52 = sphi 0, %s50
      %s53 = sphi 0, %s52
      %s67 = sphi 0, %s53
      %s71 = sphi 0, %s71
      %s73 = sphi 0, %s71
      %s74 = sphi 0, %s73
      %s88 = sphi 0, %s74
      %s94 = sphi 0, %s96
      %s97 = sphi 0, %s94
      %s98 = sphi 0, %s97
      %s114 = sphi 0, %s98
      %s120 = sphi 0, %s122
      %s123 = sphi 0, %s120
      %s124 = sphi 0, %s123
      %s140 = sphi 0, %s124
    $region4: #{tpu_custom_call.1} parent=1 // loop_header_branch
      %19 = sbr.rel (%p17) target = $region8
    $region5: #{tpu_custom_call.1} parent=1 // loop_body
      %s21 = ssub.s32 %s16, 1
      %s22 = ssub.s32 %s16, 2
      %s23 = sadd.s32 %s16, 1
      %s24 = ssub.s32 %s16, %s23
      %p25 = scmp.eq.s32.totalorder %s24, 0
      %s27 = sadd.s32 %s26, 1
      %s28 = scalar_select %p25, %s26, %s27
      %p31 = pneg %p25
      %p32 = scmp.eq.s32.totalorder %s16, 1
      %p33 = por %p31, %p32
      %p34 = scmp.ne.s32.totalorder %s26, %s29
      %p35 = scmp.eq.s32.totalorder %s16, 0
      %p36 = por %p34, %p35
      %p37 = scmp.ne.s32.totalorder %s26, %s29
      %p38 = scmp.eq.s32.totalorder %s21, 1
      %p39 = por %p37, %p38
      %p40 = scmp.ne.s32.totalorder %s29, %s30
      %p41 = scmp.eq.s32.totalorder %s21, 0
      %p42 = por %p40, %p41
      %p43 = scmp.ne.s32.totalorder %s29, %s30
      %p44 = scmp.eq.s32.totalorder %s22, 1
      %p45 = por %p43, %p44
      %p47 = scmp.ne.s32.totalorder %s30, %s46
      %p48 = scmp.eq.s32.totalorder %s22, 0
      %p49 = por %p47, %p48
      %s51 = sadd.s32 %s50, 1
      %p54 = scmp.eq.s32.totalorder %s16, 1
      %p55 = scmp.ne.s32.totalorder %s50, %s52
      %p56 = scmp.eq.s32.totalorder %s16, 0
      %p57 = por %p55, %p56
      %p58 = scmp.ne.s32.totalorder %s50, %s52
      %p59 = scmp.eq.s32.totalorder %s21, 1
      %p60 = por %p58, %p59
      %p61 = scmp.ne.s32.totalorder %s52, %s53
      %p62 = scmp.eq.s32.totalorder %s21, 0
      %p63 = por %p61, %p62
      %p64 = scmp.ne.s32.totalorder %s52, %s53
      %p65 = scmp.eq.s32.totalorder %s22, 1
      %p66 = por %p64, %p65
      %p68 = scmp.ne.s32.totalorder %s53, %s67
      %p69 = scmp.eq.s32.totalorder %s22, 0
      %p70 = por %p68, %p69
      %s72 = sadd.s32 %s71, 1
      %p75 = scmp.eq.s32.totalorder %s16, 1
      %p76 = scmp.ne.s32.totalorder %s71, %s73
      %p77 = scmp.eq.s32.totalorder %s16, 0
      %p78 = por %p76, %p77
      %p79 = scmp.ne.s32.totalorder %s71, %s73
      %p80 = scmp.eq.s32.totalorder %s21, 1
      %p81 = por %p79, %p80
      %p82 = scmp.ne.s32.totalorder %s73, %s74
      %p83 = scmp.eq.s32.totalorder %s21, 0
      %p84 = por %p82, %p83
      %p85 = scmp.ne.s32.totalorder %s73, %s74
      %p86 = scmp.eq.s32.totalorder %s22, 1
      %p87 = por %p85, %p86
      %p89 = scmp.ne.s32.totalorder %s74, %s88
      %p90 = scmp.eq.s32.totalorder %s22, 0
      %p91 = por %p89, %p90
      %s92 = ssub.s32 %s16, %s23
      %p93 = scmp.eq.s32.totalorder %s92, 0
      %s95 = sadd.s32 %s94, 1
      %s96 = scalar_select %p93, %s94, %s95
      %p99 = pneg %p93
      %p100 = scmp.eq.s32.totalorder %s16, 1
      %p101 = por %p99, %p100
      %p102 = scmp.ne.s32.totalorder %s94, %s97
      %p103 = scmp.eq.s32.totalorder %s16, 0
      %p104 = por %p102, %p103
      %p105 = scmp.ne.s32.totalorder %s94, %s97
      %p106 = scmp.eq.s32.totalorder %s21, 1
      %p107 = por %p105, %p106
      %p108 = scmp.ne.s32.totalorder %s97, %s98
      %p109 = scmp.eq.s32.totalorder %s21, 0
      %p110 = por %p108, %p109
      %p111 = scmp.ne.s32.totalorder %s97, %s98
      %p112 = scmp.eq.s32.totalorder %s22, 1
      %p113 = por %p111, %p112
      %p115 = scmp.ne.s32.totalorder %s98, %s114
      %p116 = scmp.eq.s32.totalorder %s22, 0
      %p117 = por %p115, %p116
      %s118 = ssub.s32 %s16, %s23
      %p119 = scmp.eq.s32.totalorder %s118, 0
      %s121 = sadd.s32 %s120, 1
      %s122 = scalar_select %p119, %s120, %s121
      %p125 = pneg %p119
      %p126 = scmp.eq.s32.totalorder %s16, 1
      %p127 = por %p125, %p126
      %p128 = scmp.ne.s32.totalorder %s120, %s123
      %p129 = scmp.eq.s32.totalorder %s16, 0
      %p130 = por %p128, %p129
      %p131 = scmp.ne.s32.totalorder %s120, %s123
      %p132 = scmp.eq.s32.totalorder %s21, 1
      %p133 = por %p131, %p132
      %p134 = scmp.ne.s32.totalorder %s123, %s124
      %p135 = scmp.eq.s32.totalorder %s21, 0
      %p136 = por %p134, %p135
      %p137 = scmp.ne.s32.totalorder %s123, %s124
      %p138 = scmp.eq.s32.totalorder %s22, 1
      %p139 = por %p137, %p138
      %p141 = scmp.ne.s32.totalorder %s124, %s140
      %p142 = scmp.eq.s32.totalorder %s22, 0
      %p143 = por %p141, %p142
      %p144 = scmp.le.s32.totalorder 1, %s16
      %p145 = scmp.lt.s32.totalorder %s16, 3
      %p146 = pnand %p144, %p145
      %p147 = pneg %p146
      // Predicated region
      $region9: #{tpu_custom_call.1} parent=5 // pred_check
        _
      $region10: #{tpu_custom_call.1} parent=5 // pred_check_branch
        %149 = sbr.rel (%p146) target = $region12
      $region11: #{tpu_custom_call.1} parent=5 // pred_region
        %s150 = ssub.s32 %s16, 1
        // Predicated region
        $region13: #{tpu_custom_call.1} parent=11 // pred_check
          %p151 = pneg %p63
        $region14: #{tpu_custom_call.1} parent=11 // pred_check_branch
          %153 = sbr.rel (%p151) target = $region16
        $region15: #{tpu_custom_call.1} parent=11 // pred_region
          _
        $region16: #{tpu_custom_call.1} parent=11 // pred_fallthru
          _
        // Predicated region
        $region17: #{tpu_custom_call.1} parent=11 // pred_check
          %p154 = pneg %p84
        $region18: #{tpu_custom_call.1} parent=11 // pred_check_branch
          %156 = sbr.rel (%p154) target = $region20
        $region19: #{tpu_custom_call.1} parent=11 // pred_region
          _
        $region20: #{tpu_custom_call.1} parent=11 // pred_fallthru
          _
      $region12: #{tpu_custom_call.1} parent=5 // pred_fallthru
        _
      %p157 = scmp.lt.s32.totalorder %s16, 2
      // Predicated region
      $region21: #{tpu_custom_call.1} parent=5 // pred_check
        %p158 = pneg %p157
      $region22: #{tpu_custom_call.1} parent=5 // pred_check_branch
        %160 = sbr.rel (%p158) target = $region24
      $region23: #{tpu_custom_call.1} parent=5 // pred_region
        // Predicated region
        $region25: #{tpu_custom_call.1} parent=23 // pred_check
          %p161 = pneg %p36
        $region26: #{tpu_custom_call.1} parent=23 // pred_check_branch
          %163 = sbr.rel (%p161) target = $region28
        $region27: #{tpu_custom_call.1} parent=23 // pred_region
          %p164 = scmp.lt.s32.totalorder %s16, 1
          %s165 = scalar_select %p164, %s16, 1
          %s166 = scalar_lea.vmem %s0, %s165
        $region28: #{tpu_custom_call.1} parent=23 // pred_fallthru
          _
        // Predicated region
        $region29: #{tpu_custom_call.1} parent=23 // pred_check
          %p167 = pneg %p104
        $region30: #{tpu_custom_call.1} parent=23 // pred_check_branch
          %169 = sbr.rel (%p167) target = $region32
        $region31: #{tpu_custom_call.1} parent=23 // pred_region
          %s170 = sand.u32 %s94, 1
          %s171 = scalar_lea.sflag [#allocation3], %s170
          %s172 = sand.u32 %s94, 1
          %s173 = smul.addr %s172, 96
          %s174 = scalar_lea.vmem [#allocation2], %s173
          %s176 = ssub.s32 1536, 1536
          %177 = vsyncadd %s171, %s176
          %s178 = smul.addr %s16, 128
          %s179 = scalar_lea.hbm %s3, %s178
          %s180 = sshll.u32 %s174, 4
          %s181 = int_to_ptr.vmem [resolvable:$true] %s180
          %186 = dma.hbm_to_vmem [thread:$0]  %s179, 1536, %s181, %s171, 256, 128, 8
        $region32: #{tpu_custom_call.1} parent=23 // pred_fallthru
          _
      $region24: #{tpu_custom_call.1} parent=5 // pred_fallthru
        _
      %p187 = scmp.le.s32.totalorder 1, %s16
      %p188 = scmp.lt.s32.totalorder %s16, 3
      %p189 = pnand %p187, %p188
      %p190 = pneg %p189
      // Predicated region
      $region33: #{tpu_custom_call.1} parent=5 // pred_check
        _
      $region34: #{tpu_custom_call.1} parent=5 // pred_check_branch
        %192 = sbr.rel (%p189) target = $region36
      $region35: #{tpu_custom_call.1} parent=5 // pred_region
        %s193 = ssub.s32 %s16, 1
        %s194 = sand.u32 %s97, 1
        %s195 = scalar_lea.sflag [#allocation3], %s194
        %s196 = sand.u32 %s97, 1
        %s197 = smul.addr %s196, 96
        %s198 = scalar_lea.vmem [#allocation2], %s197
        // Predicated region
        $region37: #{tpu_custom_call.1} parent=35 // pred_check
          %p199 = pneg %p110
        $region38: #{tpu_custom_call.1} parent=35 // pred_check_branch
          %201 = sbr.rel (%p199) target = $region40
        $region39: #{tpu_custom_call.1} parent=35 // pred_region
          %202 = dma.done %s195, 1536
        $region40: #{tpu_custom_call.1} parent=35 // pred_fallthru
          _
        %p203 = scmp.lt.s32.totalorder %s21, 1
        %s204 = scalar_select %p203, %s21, 1
        %s205 = scalar_lea.vmem %s0, %s204
        %p206 = pneg %p42
        %p207 = pneg %p39
        %p208 = pneg %p63
        %p209 = pneg %p60
        %p210 = pneg %p84
        %p211 = pneg %p81
        %s212 = sand.u32 %s97, 1
        %s213 = scalar_lea.sflag [#allocation3], %s212
        %s214 = sand.u32 %s97, 1
        %s215 = smul.addr %s214, 96
        %s216 = scalar_lea.vmem [#allocation2], %s215
        %p217 = pneg %p110
        %p218 = pneg %p107
        %p219 = pneg %p136
        %p220 = pneg %p133
        %s221 = sand.u32 %s123, 1
        %s222 = scalar_lea.sflag [#allocation4], %s221
        %s223 = sand.u32 %s123, 1
        %s224 = scalar_lea.vmem [#allocation5], %s223
        %p225 = scmp.lt.s32.totalorder %s21, 1
        %s226 = scalar_select %p225, %s21, 1
        %s227 = scalar_lea.vmem %s0, %s226
        %v228 = vld [vmem:[%s227] sm:$0x1]
        %v229 = vld [vmem:[%s2] sm:$0xff]
        %231 = vset.pattern.permute.xlu0 0
        %232 = vperm.xlu0 %231, %v229
        %v233 = vpop.permute.xlu0 %232
        %235 = vset.pattern.permute.xlu0 1
        %236 = vperm.xlu0 %235, %v229
        %v237 = vpop.permute.xlu0 %236
        %239 = vset.pattern.permute.xlu0 2
        %240 = vperm.xlu0 %239, %v229
        %v241 = vpop.permute.xlu0 %240
        %243 = vset.pattern.permute.xlu0 3
        %244 = vperm.xlu0 %243, %v229
        %v245 = vpop.permute.xlu0 %244
        %247 = vset.pattern.permute.xlu0 4
        %248 = vperm.xlu0 %247, %v229
        %v249 = vpop.permute.xlu0 %248
        %251 = vset.pattern.permute.xlu0 5
        %252 = vperm.xlu0 %251, %v229
        %v253 = vpop.permute.xlu0 %252
        %255 = vset.pattern.permute.xlu0 6
        %256 = vperm.xlu0 %255, %v229
        %v257 = vpop.permute.xlu0 %256
        %259 = vset.pattern.permute.xlu0 7
        %260 = vperm.xlu0 %259, %v229
        %v261 = vpop.permute.xlu0 %260
        %v263 = vld [vmem:[%s198] sm:$0xff]
        %v264 = vld [vmem:[%s1] sm:$0xff]
        %266 = vset.pattern.permute.xlu0 0
        %267 = vperm.xlu0 %266, %v264
        %v268 = vpop.permute.xlu0 %267
        %v270 = vmul.f32 %v263, %v268
        %v271 = vrot.slane %v270, 4
        %v272 = vadd.f32 %v270, %v271
        %v273 = vrot.slane %v272, 2
        %v274 = vadd.f32 %v272, %v273
        %v275 = vrot.slane %v274, 1
        %v276 = vadd.f32 %v274, %v275
        %v277 = vrcp.pop %v276
        %v278 = vmul.f32 %v270, %v277
        %vm279 = vcmp.gt.s32.totalorder %v228, 0
        %v280 = vlog2.pop %v276
        %v281 = vmul.f32 %v280, 0.6931472
        %v282 = vsel %vm279, %v281, 0.0
        %s283 = scalar_lea.vmem %s198, 8 [#allocation2]
        %v284 = vld [vmem:[%s283] sm:$0xff]
        %v285 = vlaneseq
        %v286 = vshrl.u32 %v285, 7
        %v287 = vsub.s32 0, %v286
        %v288 = vrot.slane %v278, %v287
        %v289 = vmul.f32 %v233, %v288
        %v290 = vlaneseq
        %v291 = vshrl.u32 %v290, 7
        %v292 = vsub.s32 1, %v291
        %v293 = vrot.slane %v278, %v292
        %v294 = vmul.f32 %v237, %v293
        %v295 = vadd.f32 %v289, %v294
        %v296 = vlaneseq
        %v297 = vshrl.u32 %v296, 7
        %v298 = vsub.s32 2, %v297
        %v299 = vrot.slane %v278, %v298
        %v300 = vmul.f32 %v241, %v299
        %v301 = vadd.f32 %v295, %v300
        %v302 = vlaneseq
        %v303 = vshrl.u32 %v302, 7
        %v304 = vsub.s32 3, %v303
        %v305 = vrot.slane %v278, %v304
        %v306 = vmul.f32 %v245, %v305
        %v307 = vadd.f32 %v301, %v306
        %v308 = vlaneseq
        %v309 = vshrl.u32 %v308, 7
        %v310 = vsub.s32 4, %v309
        %v311 = vrot.slane %v278, %v310
        %v312 = vmul.f32 %v249, %v311
        %v313 = vadd.f32 %v307, %v312
        %v314 = vlaneseq
        %v315 = vshrl.u32 %v314, 7
        %v316 = vsub.s32 5, %v315
        %v317 = vrot.slane %v278, %v316
        %v318 = vmul.f32 %v253, %v317
        %v319 = vadd.f32 %v313, %v318
        %v320 = vlaneseq
        %v321 = vshrl.u32 %v320, 7
        %v322 = vsub.s32 6, %v321
        %v323 = vrot.slane %v278, %v322
        %v324 = vmul.f32 %v257, %v323
        %v325 = vadd.f32 %v319, %v324
        %v326 = vlaneseq
        %v327 = vshrl.u32 %v326, 7
        %v328 = vsub.s32 7, %v327
        %v329 = vrot.slane %v278, %v328
        %v330 = vmul.f32 %v261, %v329
        %v331 = vadd.f32 %v325, %v330
        %v332 = vmul.f32 %v284, %v331
        %v333 = vrot.slane %v332, 4
        %v334 = vadd.f32 %v332, %v333
        %v335 = vrot.slane %v334, 2
        %v336 = vadd.f32 %v334, %v335
        %v337 = vrot.slane %v336, 1
        %v338 = vadd.f32 %v336, %v337
        %v339 = vrcp.pop %v338
        %v340 = vmul.f32 %v332, %v339
        %vm341 = vcmp.gt.s32.totalorder %v228, 1
        %v342 = vlog2.pop %v338
        %v343 = vmul.f32 %v342, 0.6931472
        %v344 = vadd.f32 %v282, %v343
        %v345 = vsel %vm341, %v344, %v282
        %s346 = scalar_lea.vmem %s198, 16 [#allocation2]
        %v347 = vld [vmem:[%s346] sm:$0xff]
        %v348 = vlaneseq
        %v349 = vshrl.u32 %v348, 7
        %v350 = vsub.s32 0, %v349
        %v351 = vrot.slane %v340, %v350
        %v352 = vmul.f32 %v233, %v351
        %v353 = vlaneseq
        %v354 = vshrl.u32 %v353, 7
        %v355 = vsub.s32 1, %v354
        %v356 = vrot.slane %v340, %v355
        %v357 = vmul.f32 %v237, %v356
        %v358 = vadd.f32 %v352, %v357
        %v359 = vlaneseq
        %v360 = vshrl.u32 %v359, 7
        %v361 = vsub.s32 2, %v360
        %v362 = vrot.slane %v340, %v361
        %v363 = vmul.f32 %v241, %v362
        %v364 = vadd.f32 %v358, %v363
        %v365 = vlaneseq
        %v366 = vshrl.u32 %v365, 7
        %v367 = vsub.s32 3, %v366
        %v368 = vrot.slane %v340, %v367
        %v369 = vmul.f32 %v245, %v368
        %v370 = vadd.f32 %v364, %v369
        %v371 = vlaneseq
        %v372 = vshrl.u32 %v371, 7
        %v373 = vsub.s32 4, %v372
        %v374 = vrot.slane %v340, %v373
        %v375 = vmul.f32 %v249, %v374
        %v376 = vadd.f32 %v370, %v375
        %v377 = vlaneseq
        %v378 = vshrl.u32 %v377, 7
        %v379 = vsub.s32 5, %v378
        %v380 = vrot.slane %v340, %v379
        %v381 = vmul.f32 %v253, %v380
        %v382 = vadd.f32 %v376, %v381
        %v383 = vlaneseq
        %v384 = vshrl.u32 %v383, 7
        %v385 = vsub.s32 6, %v384
        %v386 = vrot.slane %v340, %v385
        %v387 = vmul.f32 %v257, %v386
        %v388 = vadd.f32 %v382, %v387
        %v389 = vlaneseq
        %v390 = vshrl.u32 %v389, 7
        %v391 = vsub.s32 7, %v390
        %v392 = vrot.slane %v340, %v391
        %v393 = vmul.f32 %v261, %v392
        %v394 = vadd.f32 %v388, %v393
        %v395 = vmul.f32 %v347, %v394
        %v396 = vrot.slane %v395, 4
        %v397 = vadd.f32 %v395, %v396
        %v398 = vrot.slane %v397, 2
        %v399 = vadd.f32 %v397, %v398
        %v400 = vrot.slane %v399, 1
        %v401 = vadd.f32 %v399, %v400
        %v402 = vrcp.pop %v401
        %v403 = vmul.f32 %v395, %v402
        %vm404 = vcmp.gt.s32.totalorder %v228, 2
        %v405 = vlog2.pop %v401
        %v406 = vmul.f32 %v405, 0.6931472
        %v407 = vadd.f32 %v345, %v406
        %v408 = vsel %vm404, %v407, %v345
        %s409 = scalar_lea.vmem %s198, 24 [#allocation2]
        %v410 = vld [vmem:[%s409] sm:$0xff]
        %v411 = vlaneseq
        %v412 = vshrl.u32 %v411, 7
        %v413 = vsub.s32 0, %v412
        %v414 = vrot.slane %v403, %v413
        %v415 = vmul.f32 %v233, %v414
        %v416 = vlaneseq
        %v417 = vshrl.u32 %v416, 7
        %v418 = vsub.s32 1, %v417
        %v419 = vrot.slane %v403, %v418
        %v420 = vmul.f32 %v237, %v419
        %v421 = vadd.f32 %v415, %v420
        %v422 = vlaneseq
        %v423 = vshrl.u32 %v422, 7
        %v424 = vsub.s32 2, %v423
        %v425 = vrot.slane %v403, %v424
        %v426 = vmul.f32 %v241, %v425
        %v427 = vadd.f32 %v421, %v426
        %v428 = vlaneseq
        %v429 = vshrl.u32 %v428, 7
        %v430 = vsub.s32 3, %v429
        %v431 = vrot.slane %v403, %v430
        %v432 = vmul.f32 %v245, %v431
        %v433 = vadd.f32 %v427, %v432
        %v434 = vlaneseq
        %v435 = vshrl.u32 %v434, 7
        %v436 = vsub.s32 4, %v435
        %v437 = vrot.slane %v403, %v436
        %v438 = vmul.f32 %v249, %v437
        %v439 = vadd.f32 %v433, %v438
        %v440 = vlaneseq
        %v441 = vshrl.u32 %v440, 7
        %v442 = vsub.s32 5, %v441
        %v443 = vrot.slane %v403, %v442
        %v444 = vmul.f32 %v253, %v443
        %v445 = vadd.f32 %v439, %v444
        %v446 = vlaneseq
        %v447 = vshrl.u32 %v446, 7
        %v448 = vsub.s32 6, %v447
        %v449 = vrot.slane %v403, %v448
        %v450 = vmul.f32 %v257, %v449
        %v451 = vadd.f32 %v445, %v450
        %v452 = vlaneseq
        %v453 = vshrl.u32 %v452, 7
        %v454 = vsub.s32 7, %v453
        %v455 = vrot.slane %v403, %v454
        %v456 = vmul.f32 %v261, %v455
        %v457 = vadd.f32 %v451, %v456
        %v458 = vmul.f32 %v410, %v457
        %v459 = vrot.slane %v458, 4
        %v460 = vadd.f32 %v458, %v459
        %v461 = vrot.slane %v460, 2
        %v462 = vadd.f32 %v460, %v461
        %v463 = vrot.slane %v462, 1
        %v464 = vadd.f32 %v462, %v463
        %v465 = vrcp.pop %v464
        %v466 = vmul.f32 %v458, %v465
        %vm467 = vcmp.gt.s32.totalorder %v228, 3
        %v468 = vlog2.pop %v464
        %v469 = vmul.f32 %v468, 0.6931472
        %v470 = vadd.f32 %v408, %v469
        %v471 = vsel %vm467, %v470, %v408
        %s472 = scalar_lea.vmem %s198, 32 [#allocation2]
        %v473 = vld [vmem:[%s472] sm:$0xff]
        %v474 = vlaneseq
        %v475 = vshrl.u32 %v474, 7
        %v476 = vsub.s32 0, %v475
        %v477 = vrot.slane %v466, %v476
        %v478 = vmul.f32 %v233, %v477
        %v479 = vlaneseq
        %v480 = vshrl.u32 %v479, 7
        %v481 = vsub.s32 1, %v480
        %v482 = vrot.slane %v466, %v481
        %v483 = vmul.f32 %v237, %v482
        %v484 = vadd.f32 %v478, %v483
        %v485 = vlaneseq
        %v486 = vshrl.u32 %v485, 7
        %v487 = vsub.s32 2, %v486
        %v488 = vrot.slane %v466, %v487
        %v489 = vmul.f32 %v241, %v488
        %v490 = vadd.f32 %v484, %v489
        %v491 = vlaneseq
        %v492 = vshrl.u32 %v491, 7
        %v493 = vsub.s32 3, %v492
        %v494 = vrot.slane %v466, %v493
        %v495 = vmul.f32 %v245, %v494
        %v496 = vadd.f32 %v490, %v495
        %v497 = vlaneseq
        %v498 = vshrl.u32 %v497, 7
        %v499 = vsub.s32 4, %v498
        %v500 = vrot.slane %v466, %v499
        %v501 = vmul.f32 %v249, %v500
        %v502 = vadd.f32 %v496, %v501
        %v503 = vlaneseq
        %v504 = vshrl.u32 %v503, 7
        %v505 = vsub.s32 5, %v504
        %v506 = vrot.slane %v466, %v505
        %v507 = vmul.f32 %v253, %v506
        %v508 = vadd.f32 %v502, %v507
        %v509 = vlaneseq
        %v510 = vshrl.u32 %v509, 7
        %v511 = vsub.s32 6, %v510
        %v512 = vrot.slane %v466, %v511
        %v513 = vmul.f32 %v257, %v512
        %v514 = vadd.f32 %v508, %v513
        %v515 = vlaneseq
        %v516 = vshrl.u32 %v515, 7
        %v517 = vsub.s32 7, %v516
        %v518 = vrot.slane %v466, %v517
        %v519 = vmul.f32 %v261, %v518
        %v520 = vadd.f32 %v514, %v519
        %v521 = vmul.f32 %v473, %v520
        %v522 = vrot.slane %v521, 4
        %v523 = vadd.f32 %v521, %v522
        %v524 = vrot.slane %v523, 2
        %v525 = vadd.f32 %v523, %v524
        %v526 = vrot.slane %v525, 1
        %v527 = vadd.f32 %v525, %v526
        %v528 = vrcp.pop %v527
        %v529 = vmul.f32 %v521, %v528
        %vm530 = vcmp.gt.s32.totalorder %v228, 4
        %v531 = vlog2.pop %v527
        %v532 = vmul.f32 %v531, 0.6931472
        %v533 = vadd.f32 %v471, %v532
        %v534 = vsel %vm530, %v533, %v471
        %s535 = scalar_lea.vmem %s198, 40 [#allocation2]
        %v536 = vld [vmem:[%s535] sm:$0xff]
        %v537 = vlaneseq
        %v538 = vshrl.u32 %v537, 7
        %v539 = vsub.s32 0, %v538
        %v540 = vrot.slane %v529, %v539
        %v541 = vmul.f32 %v233, %v540
        %v542 = vlaneseq
        %v543 = vshrl.u32 %v542, 7
        %v544 = vsub.s32 1, %v543
        %v545 = vrot.slane %v529, %v544
        %v546 = vmul.f32 %v237, %v545
        %v547 = vadd.f32 %v541, %v546
        %v548 = vlaneseq
        %v549 = vshrl.u32 %v548, 7
        %v550 = vsub.s32 2, %v549
        %v551 = vrot.slane %v529, %v550
        %v552 = vmul.f32 %v241, %v551
        %v553 = vadd.f32 %v547, %v552
        %v554 = vlaneseq
        %v555 = vshrl.u32 %v554, 7
        %v556 = vsub.s32 3, %v555
        %v557 = vrot.slane %v529, %v556
        %v558 = vmul.f32 %v245, %v557
        %v559 = vadd.f32 %v553, %v558
        %v560 = vlaneseq
        %v561 = vshrl.u32 %v560, 7
        %v562 = vsub.s32 4, %v561
        %v563 = vrot.slane %v529, %v562
        %v564 = vmul.f32 %v249, %v563
        %v565 = vadd.f32 %v559, %v564
        %v566 = vlaneseq
        %v567 = vshrl.u32 %v566, 7
        %v568 = vsub.s32 5, %v567
        %v569 = vrot.slane %v529, %v568
        %v570 = vmul.f32 %v253, %v569
        %v571 = vadd.f32 %v565, %v570
        %v572 = vlaneseq
        %v573 = vshrl.u32 %v572, 7
        %v574 = vsub.s32 6, %v573
        %v575 = vrot.slane %v529, %v574
        %v576 = vmul.f32 %v257, %v575
        %v577 = vadd.f32 %v571, %v576
        %v578 = vlaneseq
        %v579 = vshrl.u32 %v578, 7
        %v580 = vsub.s32 7, %v579
        %v581 = vrot.slane %v529, %v580
        %v582 = vmul.f32 %v261, %v581
        %v583 = vadd.f32 %v577, %v582
        %v584 = vmul.f32 %v536, %v583
        %v585 = vrot.slane %v584, 4
        %v586 = vadd.f32 %v584, %v585
        %v587 = vrot.slane %v586, 2
        %v588 = vadd.f32 %v586, %v587
        %v589 = vrot.slane %v588, 1
        %v590 = vadd.f32 %v588, %v589
        %v591 = vrcp.pop %v590
        %v592 = vmul.f32 %v584, %v591
        %vm593 = vcmp.gt.s32.totalorder %v228, 5
        %v594 = vlog2.pop %v590
        %v595 = vmul.f32 %v594, 0.6931472
        %v596 = vadd.f32 %v534, %v595
        %v597 = vsel %vm593, %v596, %v534
        %s598 = scalar_lea.vmem %s198, 48 [#allocation2]
        %v599 = vld [vmem:[%s598] sm:$0xff]
        %v600 = vlaneseq
        %v601 = vshrl.u32 %v600, 7
        %v602 = vsub.s32 0, %v601
        %v603 = vrot.slane %v592, %v602
        %v604 = vmul.f32 %v233, %v603
        %v605 = vlaneseq
        %v606 = vshrl.u32 %v605, 7
        %v607 = vsub.s32 1, %v606
        %v608 = vrot.slane %v592, %v607
        %v609 = vmul.f32 %v237, %v608
        %v610 = vadd.f32 %v604, %v609
        %v611 = vlaneseq
        %v612 = vshrl.u32 %v611, 7
        %v613 = vsub.s32 2, %v612
        %v614 = vrot.slane %v592, %v613
        %v615 = vmul.f32 %v241, %v614
        %v616 = vadd.f32 %v610, %v615
        %v617 = vlaneseq
        %v618 = vshrl.u32 %v617, 7
        %v619 = vsub.s32 3, %v618
        %v620 = vrot.slane %v592, %v619
        %v621 = vmul.f32 %v245, %v620
        %v622 = vadd.f32 %v616, %v621
        %v623 = vlaneseq
        %v624 = vshrl.u32 %v623, 7
        %v625 = vsub.s32 4, %v624
        %v626 = vrot.slane %v592, %v625
        %v627 = vmul.f32 %v249, %v626
        %v628 = vadd.f32 %v622, %v627
        %v629 = vlaneseq
        %v630 = vshrl.u32 %v629, 7
        %v631 = vsub.s32 5, %v630
        %v632 = vrot.slane %v592, %v631
        %v633 = vmul.f32 %v253, %v632
        %v634 = vadd.f32 %v628, %v633
        %v635 = vlaneseq
        %v636 = vshrl.u32 %v635, 7
        %v637 = vsub.s32 6, %v636
        %v638 = vrot.slane %v592, %v637
        %v639 = vmul.f32 %v257, %v638
        %v640 = vadd.f32 %v634, %v639
        %v641 = vlaneseq
        %v642 = vshrl.u32 %v641, 7
        %v643 = vsub.s32 7, %v642
        %v644 = vrot.slane %v592, %v643
        %v645 = vmul.f32 %v261, %v644
        %v646 = vadd.f32 %v640, %v645
        %v647 = vmul.f32 %v599, %v646
        %v648 = vrot.slane %v647, 4
        %v649 = vadd.f32 %v647, %v648
        %v650 = vrot.slane %v649, 2
        %v651 = vadd.f32 %v649, %v650
        %v652 = vrot.slane %v651, 1
        %v653 = vadd.f32 %v651, %v652
        %v654 = vrcp.pop %v653
        %v655 = vmul.f32 %v647, %v654
        %vm656 = vcmp.gt.s32.totalorder %v228, 6
        %v657 = vlog2.pop %v653
        %v658 = vmul.f32 %v657, 0.6931472
        %v659 = vadd.f32 %v597, %v658
        %v660 = vsel %vm656, %v659, %v597
        %s661 = scalar_lea.vmem %s198, 56 [#allocation2]
        %v662 = vld [vmem:[%s661] sm:$0xff]
        %v663 = vlaneseq
        %v664 = vshrl.u32 %v663, 7
        %v665 = vsub.s32 0, %v664
        %v666 = vrot.slane %v655, %v665
        %v667 = vmul.f32 %v233, %v666
        %v668 = vlaneseq
        %v669 = vshrl.u32 %v668, 7
        %v670 = vsub.s32 1, %v669
        %v671 = vrot.slane %v655, %v670
        %v672 = vmul.f32 %v237, %v671
        %v673 = vadd.f32 %v667, %v672
        %v674 = vlaneseq
        %v675 = vshrl.u32 %v674, 7
        %v676 = vsub.s32 2, %v675
        %v677 = vrot.slane %v655, %v676
        %v678 = vmul.f32 %v241, %v677
        %v679 = vadd.f32 %v673, %v678
        %v680 = vlaneseq
        %v681 = vshrl.u32 %v680, 7
        %v682 = vsub.s32 3, %v681
        %v683 = vrot.slane %v655, %v682
        %v684 = vmul.f32 %v245, %v683
        %v685 = vadd.f32 %v679, %v684
        %v686 = vlaneseq
        %v687 = vshrl.u32 %v686, 7
        %v688 = vsub.s32 4, %v687
        %v689 = vrot.slane %v655, %v688
        %v690 = vmul.f32 %v249, %v689
        %v691 = vadd.f32 %v685, %v690
        %v692 = vlaneseq
        %v693 = vshrl.u32 %v692, 7
        %v694 = vsub.s32 5, %v693
        %v695 = vrot.slane %v655, %v694
        %v696 = vmul.f32 %v253, %v695
        %v697 = vadd.f32 %v691, %v696
        %v698 = vlaneseq
        %v699 = vshrl.u32 %v698, 7
        %v700 = vsub.s32 6, %v699
        %v701 = vrot.slane %v655, %v700
        %v702 = vmul.f32 %v257, %v701
        %v703 = vadd.f32 %v697, %v702
        %v704 = vlaneseq
        %v705 = vshrl.u32 %v704, 7
        %v706 = vsub.s32 7, %v705
        %v707 = vrot.slane %v655, %v706
        %v708 = vmul.f32 %v261, %v707
        %v709 = vadd.f32 %v703, %v708
        %v710 = vmul.f32 %v662, %v709
        %v711 = vrot.slane %v710, 4
        %v712 = vadd.f32 %v710, %v711
        %v713 = vrot.slane %v712, 2
        %v714 = vadd.f32 %v712, %v713
        %v715 = vrot.slane %v714, 1
        %v716 = vadd.f32 %v714, %v715
        %v717 = vrcp.pop %v716
        %v718 = vmul.f32 %v710, %v717
        %vm719 = vcmp.gt.s32.totalorder %v228, 7
        %v720 = vlog2.pop %v716
        %v721 = vmul.f32 %v720, 0.6931472
        %v722 = vadd.f32 %v660, %v721
        %v723 = vsel %vm719, %v722, %v660
        %s724 = scalar_lea.vmem %s198, 64 [#allocation2]
        %v725 = vld [vmem:[%s724] sm:$0xff]
        %v726 = vlaneseq
        %v727 = vshrl.u32 %v726, 7
        %v728 = vsub.s32 0, %v727
        %v729 = vrot.slane %v718, %v728
        %v730 = vmul.f32 %v233, %v729
        %v731 = vlaneseq
        %v732 = vshrl.u32 %v731, 7
        %v733 = vsub.s32 1, %v732
        %v734 = vrot.slane %v718, %v733
        %v735 = vmul.f32 %v237, %v734
        %v736 = vadd.f32 %v730, %v735
        %v737 = vlaneseq
        %v738 = vshrl.u32 %v737, 7
        %v739 = vsub.s32 2, %v738
        %v740 = vrot.slane %v718, %v739
        %v741 = vmul.f32 %v241, %v740
        %v742 = vadd.f32 %v736, %v741
        %v743 = vlaneseq
        %v744 = vshrl.u32 %v743, 7
        %v745 = vsub.s32 3, %v744
        %v746 = vrot.slane %v718, %v745
        %v747 = vmul.f32 %v245, %v746
        %v748 = vadd.f32 %v742, %v747
        %v749 = vlaneseq
        %v750 = vshrl.u32 %v749, 7
        %v751 = vsub.s32 4, %v750
        %v752 = vrot.slane %v718, %v751
        %v753 = vmul.f32 %v249, %v752
        %v754 = vadd.f32 %v748, %v753
        %v755 = vlaneseq
        %v756 = vshrl.u32 %v755, 7
        %v757 = vsub.s32 5, %v756
        %v758 = vrot.slane %v718, %v757
        %v759 = vmul.f32 %v253, %v758
        %v760 = vadd.f32 %v754, %v759
        %v761 = vlaneseq
        %v762 = vshrl.u32 %v761, 7
        %v763 = vsub.s32 6, %v762
        %v764 = vrot.slane %v718, %v763
        %v765 = vmul.f32 %v257, %v764
        %v766 = vadd.f32 %v760, %v765
        %v767 = vlaneseq
        %v768 = vshrl.u32 %v767, 7
        %v769 = vsub.s32 7, %v768
        %v770 = vrot.slane %v718, %v769
        %v771 = vmul.f32 %v261, %v770
        %v772 = vadd.f32 %v766, %v771
        %v773 = vmul.f32 %v725, %v772
        %v774 = vrot.slane %v773, 4
        %v775 = vadd.f32 %v773, %v774
        %v776 = vrot.slane %v775, 2
        %v777 = vadd.f32 %v775, %v776
        %v778 = vrot.slane %v777, 1
        %v779 = vadd.f32 %v777, %v778
        %v780 = vrcp.pop %v779
        %v781 = vmul.f32 %v773, %v780
        %vm782 = vcmp.gt.s32.totalorder %v228, 8
        %v783 = vlog2.pop %v779
        %v784 = vmul.f32 %v783, 0.6931472
        %v785 = vadd.f32 %v723, %v784
        %v786 = vsel %vm782, %v785, %v723
        %s787 = scalar_lea.vmem %s198, 72 [#allocation2]
        %v788 = vld [vmem:[%s787] sm:$0xff]
        %v789 = vlaneseq
        %v790 = vshrl.u32 %v789, 7
        %v791 = vsub.s32 0, %v790
        %v792 = vrot.slane %v781, %v791
        %v793 = vmul.f32 %v233, %v792
        %v794 = vlaneseq
        %v795 = vshrl.u32 %v794, 7
        %v796 = vsub.s32 1, %v795
        %v797 = vrot.slane %v781, %v796
        %v798 = vmul.f32 %v237, %v797
        %v799 = vadd.f32 %v793, %v798
        %v800 = vlaneseq
        %v801 = vshrl.u32 %v800, 7
        %v802 = vsub.s32 2, %v801
        %v803 = vrot.slane %v781, %v802
        %v804 = vmul.f32 %v241, %v803
        %v805 = vadd.f32 %v799, %v804
        %v806 = vlaneseq
        %v807 = vshrl.u32 %v806, 7
        %v808 = vsub.s32 3, %v807
        %v809 = vrot.slane %v781, %v808
        %v810 = vmul.f32 %v245, %v809
        %v811 = vadd.f32 %v805, %v810
        %v812 = vlaneseq
        %v813 = vshrl.u32 %v812, 7
        %v814 = vsub.s32 4, %v813
        %v815 = vrot.slane %v781, %v814
        %v816 = vmul.f32 %v249, %v815
        %v817 = vadd.f32 %v811, %v816
        %v818 = vlaneseq
        %v819 = vshrl.u32 %v818, 7
        %v820 = vsub.s32 5, %v819
        %v821 = vrot.slane %v781, %v820
        %v822 = vmul.f32 %v253, %v821
        %v823 = vadd.f32 %v817, %v822
        %v824 = vlaneseq
        %v825 = vshrl.u32 %v824, 7
        %v826 = vsub.s32 6, %v825
        %v827 = vrot.slane %v781, %v826
        %v828 = vmul.f32 %v257, %v827
        %v829 = vadd.f32 %v823, %v828
        %v830 = vlaneseq
        %v831 = vshrl.u32 %v830, 7
        %v832 = vsub.s32 7, %v831
        %v833 = vrot.slane %v781, %v832
        %v834 = vmul.f32 %v261, %v833
        %v835 = vadd.f32 %v829, %v834
        %v836 = vmul.f32 %v788, %v835
        %v837 = vrot.slane %v836, 4
        %v838 = vadd.f32 %v836, %v837
        %v839 = vrot.slane %v838, 2
        %v840 = vadd.f32 %v838, %v839
        %v841 = vrot.slane %v840, 1
        %v842 = vadd.f32 %v840, %v841
        %v843 = vrcp.pop %v842
        %v844 = vmul.f32 %v836, %v843
        %vm845 = vcmp.gt.s32.totalorder %v228, 9
        %v846 = vlog2.pop %v842
        %v847 = vmul.f32 %v846, 0.6931472
        %v848 = vadd.f32 %v786, %v847
        %v849 = vsel %vm845, %v848, %v786
        %s850 = scalar_lea.vmem %s198, 80 [#allocation2]
        %v851 = vld [vmem:[%s850] sm:$0xff]
        %v852 = vlaneseq
        %v853 = vshrl.u32 %v852, 7
        %v854 = vsub.s32 0, %v853
        %v855 = vrot.slane %v844, %v854
        %v856 = vmul.f32 %v233, %v855
        %v857 = vlaneseq
        %v858 = vshrl.u32 %v857, 7
        %v859 = vsub.s32 1, %v858
        %v860 = vrot.slane %v844, %v859
        %v861 = vmul.f32 %v237, %v860
        %v862 = vadd.f32 %v856, %v861
        %v863 = vlaneseq
        %v864 = vshrl.u32 %v863, 7
        %v865 = vsub.s32 2, %v864
        %v866 = vrot.slane %v844, %v865
        %v867 = vmul.f32 %v241, %v866
        %v868 = vadd.f32 %v862, %v867
        %v869 = vlaneseq
        %v870 = vshrl.u32 %v869, 7
        %v871 = vsub.s32 3, %v870
        %v872 = vrot.slane %v844, %v871
        %v873 = vmul.f32 %v245, %v872
        %v874 = vadd.f32 %v868, %v873
        %v875 = vlaneseq
        %v876 = vshrl.u32 %v875, 7
        %v877 = vsub.s32 4, %v876
        %v878 = vrot.slane %v844, %v877
        %v879 = vmul.f32 %v249, %v878
        %v880 = vadd.f32 %v874, %v879
        %v881 = vlaneseq
        %v882 = vshrl.u32 %v881, 7
        %v883 = vsub.s32 5, %v882
        %v884 = vrot.slane %v844, %v883
        %v885 = vmul.f32 %v253, %v884
        %v886 = vadd.f32 %v880, %v885
        %v887 = vlaneseq
        %v888 = vshrl.u32 %v887, 7
        %v889 = vsub.s32 6, %v888
        %v890 = vrot.slane %v844, %v889
        %v891 = vmul.f32 %v257, %v890
        %v892 = vadd.f32 %v886, %v891
        %v893 = vlaneseq
        %v894 = vshrl.u32 %v893, 7
        %v895 = vsub.s32 7, %v894
        %v896 = vrot.slane %v844, %v895
        %v897 = vmul.f32 %v261, %v896
        %v898 = vadd.f32 %v892, %v897
        %v899 = vmul.f32 %v851, %v898
        %v900 = vrot.slane %v899, 4
        %v901 = vadd.f32 %v899, %v900
        %v902 = vrot.slane %v901, 2
        %v903 = vadd.f32 %v901, %v902
        %v904 = vrot.slane %v903, 1
        %v905 = vadd.f32 %v903, %v904
        %v906 = vrcp.pop %v905
        %v907 = vmul.f32 %v899, %v906
        %vm908 = vcmp.gt.s32.totalorder %v228, 10
        %v909 = vlog2.pop %v905
        %v910 = vmul.f32 %v909, 0.6931472
        %v911 = vadd.f32 %v849, %v910
        %v912 = vsel %vm908, %v911, %v849
        %s913 = scalar_lea.vmem %s198, 88 [#allocation2]
        %v914 = vld [vmem:[%s913] sm:$0xff]
        %v915 = vlaneseq
        %v916 = vshrl.u32 %v915, 7
        %v917 = vsub.s32 0, %v916
        %v918 = vrot.slane %v907, %v917
        %v919 = vmul.f32 %v233, %v918
        %v920 = vlaneseq
        %v921 = vshrl.u32 %v920, 7
        %v922 = vsub.s32 1, %v921
        %v923 = vrot.slane %v907, %v922
        %v924 = vmul.f32 %v237, %v923
        %v925 = vadd.f32 %v919, %v924
        %v926 = vlaneseq
        %v927 = vshrl.u32 %v926, 7
        %v928 = vsub.s32 2, %v927
        %v929 = vrot.slane %v907, %v928
        %v930 = vmul.f32 %v241, %v929
        %v931 = vadd.f32 %v925, %v930
        %v932 = vlaneseq
        %v933 = vshrl.u32 %v932, 7
        %v934 = vsub.s32 3, %v933
        %v935 = vrot.slane %v907, %v934
        %v936 = vmul.f32 %v245, %v935
        %v937 = vadd.f32 %v931, %v936
        %v938 = vlaneseq
        %v939 = vshrl.u32 %v938, 7
        %v940 = vsub.s32 4, %v939
        %v941 = vrot.slane %v907, %v940
        %v942 = vmul.f32 %v249, %v941
        %v943 = vadd.f32 %v937, %v942
        %v944 = vlaneseq
        %v945 = vshrl.u32 %v944, 7
        %v946 = vsub.s32 5, %v945
        %v947 = vrot.slane %v907, %v946
        %v948 = vmul.f32 %v253, %v947
        %v949 = vadd.f32 %v943, %v948
        %v950 = vlaneseq
        %v951 = vshrl.u32 %v950, 7
        %v952 = vsub.s32 6, %v951
        %v953 = vrot.slane %v907, %v952
        %v954 = vmul.f32 %v257, %v953
        %v955 = vadd.f32 %v949, %v954
        %v956 = vlaneseq
        %v957 = vshrl.u32 %v956, 7
        %v958 = vsub.s32 7, %v957
        %v959 = vrot.slane %v907, %v958
        %v960 = vmul.f32 %v261, %v959
        %v961 = vadd.f32 %v955, %v960
        %v962 = vmul.f32 %v914, %v961
        %v963 = vrot.slane %v962, 4
        %v964 = vadd.f32 %v962, %v963
        %v965 = vrot.slane %v964, 2
        %v966 = vadd.f32 %v964, %v965
        %v967 = vrot.slane %v966, 1
        %v968 = vadd.f32 %v966, %v967
        %vm969 = vcmp.gt.s32.totalorder %v228, 11
        %v970 = vlog2.pop %v968
        %v971 = vmul.f32 %v970, 0.6931472
        %v972 = vadd.f32 %v912, %v971
        %v973 = vsel %vm969, %v972, %v912
        %v974 = vmul.f32 %v973, 1.442695
        %v975 = vpow.pop %v974
        %976 = vst [vmem:[%s224] sm:$0x1] %v975
        %s977 = sand.u32 %s123, 1
        %s978 = scalar_lea.sflag [#allocation4], %s977
        %s979 = sand.u32 %s123, 1
        %s980 = scalar_lea.vmem [#allocation5], %s979
        // Predicated region
        $region41: #{tpu_custom_call.1} parent=35 // pred_check
          %p981 = pneg %p133
        $region42: #{tpu_custom_call.1} parent=35 // pred_check_branch
          %983 = sbr.rel (%p981) target = $region44
        $region43: #{tpu_custom_call.1} parent=35 // pred_region
          %s985 = ssub.s32 16, 16
          %986 = vsyncadd %s978, %s985
          %s987 = smul.addr %s21, 16
          %s988 = scalar_lea.hbm %s4, %s987
          %s990 = sshll.u32 %s980, 4
          %s991 = int_to_ptr.vmem [resolvable:$true] %s990
          %993 = dma.vmem_to_hbm [thread:$0]  %s991, 16, %s988, %s978
        $region44: #{tpu_custom_call.1} parent=35 // pred_fallthru
          _
      $region36: #{tpu_custom_call.1} parent=5 // pred_fallthru
        _
      %p994 = scmp.le.s32.totalorder 2, %s16
      // Predicated region
      $region45: #{tpu_custom_call.1} parent=5 // pred_check
        %p995 = pneg %p994
      $region46: #{tpu_custom_call.1} parent=5 // pred_check_branch
        %997 = sbr.rel (%p995) target = $region48
      $region47: #{tpu_custom_call.1} parent=5 // pred_region
        %s998 = ssub.s32 %s16, 2
        // Predicated region
        $region49: #{tpu_custom_call.1} parent=47 // pred_check
          %p999 = pneg %p139
        $region50: #{tpu_custom_call.1} parent=47 // pred_check_branch
          %1001 = sbr.rel (%p999) target = $region52
        $region51: #{tpu_custom_call.1} parent=47 // pred_region
          %s1002 = sand.u32 %s124, 1
          %s1003 = scalar_lea.sflag [#allocation4], %s1002
          %s1004 = sand.u32 %s124, 1
          %s1005 = scalar_lea.vmem [#allocation5], %s1004
          %1006 = dma.done %s1003, 16
        $region52: #{tpu_custom_call.1} parent=47 // pred_fallthru
          _
      $region48: #{tpu_custom_call.1} parent=5 // pred_fallthru
        _
    $region6: #{tpu_custom_call.1} parent=1 // loop_footer
      %s20 = sadd.s32 1, %s16
    $region7: #{tpu_custom_call.1} parent=1 // loop_footer_branch
      %15 = sbr.rel target = $region3
    $region8: #{tpu_custom_call.1} parent=1 // loop_exit
      _
    %1007 = vsyncpa [#allocation3], 1
    %s1008 = scalar_lea.sflag [#allocation3], 1
    %1009 = vsyncpa %s1008, 1
    %1010 = vsyncpa [#allocation4], 1
    %s1011 = scalar_lea.sflag [#allocation4], 1
    %1012 = vsyncpa %s1011, 1

</llo_original>
